<compile_context>
chip_gen: v6e
topology: v6e:2x2x1
jax: 0.10.0
libtpu: 0.0.40
codegen_flags: <defaults>
</compile_context>

<pallas_src>
from functools import partial

import jax
import jax.numpy as jnp
from jax.experimental import pallas as pl
from jax.experimental.pallas import tpu as pltpu

_BN_EPS = 1e-5


def _round_up(x, m):
    return ((x + m - 1) // m) * m


def _pick_vmem_limit():
    """Scoped-VMEM budget with headroom (v7x: 64 MiB phys -> 48 MiB;
    v5e/v6e: 128 MiB phys -> 96 MiB)."""
    try:
        cap = pltpu.get_tpu_info().vmem_capacity_bytes
    except Exception:
        cap = 64 * 1024 * 1024
    return int(min(int(cap * 0.75), 96 * 1024 * 1024))


# ---------------------------------------------------------------------------
# Pass 1: conv-as-matmul (MXU), K-tiled with f32 accumulator; on the last K
# step emit the bf16 conv output tile plus per-tile channel sum / sum-of-sq.
# ---------------------------------------------------------------------------
def conv_partial_kernel(p_ref, w_ref, y_ref, s_ref, ss_ref, acc_ref):
    # p_ref : (tm, tk)     bf16 im2col patches (one M x K tile)
    # w_ref : (tk, Cp)     bf16 reshaped conv weight (lane-padded to 128)
    # y_ref : (tm, Cp)     bf16 conv output tile (resident across the K sweep)
    # s_ref : (1, 1, Cp)   f32 per-M-tile sum over rows
    # ss_ref: (1, 1, Cp)   f32 per-M-tile sum of squares over rows
    # acc_ref: (tm, Cp)    f32 VMEM accumulator scratch
    k = pl.program_id(1)

    @pl.when(k == 0)
    def _init():
        acc_ref[...] = jnp.zeros_like(acc_ref)

    acc_ref[...] += jnp.dot(p_ref[...], w_ref[...],
                            preferred_element_type=jnp.float32)

    @pl.when(k == pl.num_programs(1) - 1)
    def _finalize():
        y = acc_ref[...]                                   # exact f32
        y_ref[...] = y.astype(y_ref.dtype)                 # bf16 writeback
        s_ref[...] = jnp.sum(y, axis=0, keepdims=True)[None]
        ss_ref[...] = jnp.sum(y * y, axis=0, keepdims=True)[None]


# ---------------------------------------------------------------------------
# Pass 2: folded BatchNorm (per-channel scale/shift) + SiLU, bf16 in, f32 math,
# store only the real Cout lanes.
# ---------------------------------------------------------------------------
def bn_silu_kernel(y_ref, a_ref, b_ref, o_ref, *, cout):
    z = y_ref[...].astype(jnp.float32) * a_ref[...] + b_ref[...]
    act = z * jax.nn.sigmoid(z)
    o_ref[...] = act[:, :cout].astype(o_ref.dtype)


# ---------------------------------------------------------------------------
# im2col in plain JAX (bf16 in, bf16 out): (N,Cin,H,W) -> (M=N*Ho*Wo, K=Cin*k*k)
# feature order (cin, ky, kx) matching weight.reshape(Cout, Cin*k*k).
# TODO(synk): replace with in-kernel shifted-window accumulation to drop the
# k^2 HBM read amplification.
# ---------------------------------------------------------------------------
def im2col(x_nchw, ksize, stride, pad):
    N, C, H, W = x_nchw.shape
    Ho = (H + 2 * pad - ksize) // stride + 1
    Wo = (W + 2 * pad - ksize) // stride + 1
    xp = jnp.pad(x_nchw, ((0, 0), (0, 0), (pad, pad), (pad, pad)))
    cols = []
    for ky in range(ksize):
        for kx in range(ksize):
            sl = xp[:, :, ky:ky + stride * Ho:stride, kx:kx + stride * Wo:stride]
            cols.append(sl)  # (N, C, Ho, Wo)
    p = jnp.stack(cols, axis=0).reshape(ksize, ksize, N, C, Ho, Wo)
    p = p.transpose(2, 4, 5, 3, 0, 1)  # (N, Ho, Wo, C, ky, kx)
    return p.reshape(N * Ho * Wo, C * ksize * ksize), Ho, Wo


# ---------------------------------------------------------------------------
# BaseConv forward (conv -> bn(batch stats) -> silu)
# ---------------------------------------------------------------------------
def base_conv_forward(x_nchw, weight, gamma, beta, *, ksize, stride,
                      tile_m=None, compute_dtype=jnp.bfloat16):
    pad = (ksize - 1) // 2
    N, Cin, H, W = x_nchw.shape
    Cout = weight.shape[0]

    vmem_limit = _pick_vmem_limit()
    if tile_m is None:
        # bigger M tiles when VMEM allows (v5e/v6e); tighter on v7x.
        tile_m = 1024 if vmem_limit >= 80 * 1024 * 1024 else 512

    # im2col on bf16 input (halves the gather-stage HBM traffic).
    patches, Ho, Wo = im2col(x_nchw.astype(compute_dtype), ksize, stride, pad)
    M, K = patches.shape

    # Lane-dense output channels for the intermediate: pad Cout up to 128.
    Cp = _round_up(max(Cout, 128), 128)

    # Contraction axis: pad to a multiple of 128 (MXU/lane alignment) and tile.
    Kp = _round_up(K, 128)
    if Kp > 512:
        tk = 512
        Kp = _round_up(Kp, tk)
    else:
        tk = Kp
    n_k = Kp // tk

    # Tile M; pad to a whole number of tiles (zero rows contribute 0 to the
    # sums, and BN divides by the real M, so the stats remain exact).
    tm = min(tile_m, _round_up(M, 8))
    M_pad = _round_up(M, tm)
    n_m = M_pad // tm

    patches = jnp.pad(patches, ((0, M_pad - M), (0, Kp - K)))
    w2d = weight.reshape(Cout, Cin * ksize * ksize).T              # (K, Cout)
    w2d = jnp.pad(w2d, ((0, Kp - K), (0, Cp - Cout))).astype(compute_dtype)

    itemsize_c = jnp.dtype(compute_dtype).itemsize

    # ---- pass 1: K-tiled conv matmul + per-M-tile channel sums --------------
    cost1 = pl.CostEstimate(
        flops=2 * M_pad * Kp * Cp + 3 * M_pad * Cp,
        transcendentals=0,
        bytes_accessed=(M_pad * Kp * itemsize_c            # patches
                        + n_m * Kp * Cp * itemsize_c       # weight (re-fetched)
                        + M_pad * Cp * itemsize_c          # y (bf16) write
                        + 2 * n_m * Cp * 4),               # partial sums
    )
    y_bf16, part_sum, part_sumsq = pl.pallas_call(
        conv_partial_kernel,
        out_shape=(
            jax.ShapeDtypeStruct((M_pad, Cp), compute_dtype),
            jax.ShapeDtypeStruct((n_m, 1, Cp), jnp.float32),
            jax.ShapeDtypeStruct((n_m, 1, Cp), jnp.float32),
        ),
        grid_spec=pltpu.PrefetchScalarGridSpec(
            num_scalar_prefetch=0,
            grid=(n_m, n_k),
            in_specs=[
                pl.BlockSpec((tm, tk), lambda i, k: (i, k)),
                pl.BlockSpec((tk, Cp), lambda i, k: (k, 0)),
            ],
            out_specs=[
                pl.BlockSpec((tm, Cp), lambda i, k: (i, 0)),
                pl.BlockSpec((1, 1, Cp), lambda i, k: (i, 0, 0)),
                pl.BlockSpec((1, 1, Cp), lambda i, k: (i, 0, 0)),
            ],
            scratch_shapes=[pltpu.VMEM((tm, Cp), jnp.float32)],
        ),
        compiler_params=pltpu.CompilerParams(
            dimension_semantics=("parallel", "arbitrary"),
            vmem_limit_bytes=vmem_limit,
        ),
        cost_estimate=cost1,
    )(patches, w2d)

    # ---- tiny per-channel reduction + BN fold (plain JAX, all f32) ----------
    # NOTE: E[y^2]-E[y]^2 in f32 can lose precision for huge M / large
    # activations; acceptable here, clamped at 0 for safety.
    total_sum = jnp.sum(part_sum, axis=(0, 1))                     # (Cp,)
    total_sumsq = jnp.sum(part_sumsq, axis=(0, 1))                 # (Cp,)
    mean = total_sum / M
    var = jnp.maximum(total_sumsq / M - mean * mean, 0.0)          # biased var
    gamma_p = jnp.pad(gamma.astype(jnp.float32), (0, Cp - Cout))
    beta_p = jnp.pad(beta.astype(jnp.float32), (0, Cp - Cout))
    a = gamma_p * jax.lax.rsqrt(var + _BN_EPS)
    b = beta_p - mean * a

    # ---- pass 2: folded BN + SiLU, bf16 load, Cout-lane store ---------------
    cost2 = pl.CostEstimate(
        flops=4 * M_pad * Cp,
        transcendentals=M_pad * Cp,
        bytes_accessed=M_pad * Cp * itemsize_c + M_pad * Cout * 4 + 2 * Cp * 4,
    )
    out_flat = pl.pallas_call(
        partial(bn_silu_kernel, cout=Cout),
        out_shape=jax.ShapeDtypeStruct((M_pad, Cout), jnp.float32),
        grid_spec=pltpu.PrefetchScalarGridSpec(
            num_scalar_prefetch=0,
            grid=(n_m,),
            in_specs=[
                pl.BlockSpec((tm, Cp), lambda i: (i, 0)),
                pl.BlockSpec((1, Cp), lambda i: (0, 0)),
                pl.BlockSpec((1, Cp), lambda i: (0, 0)),
            ],
            out_specs=pl.BlockSpec((tm, Cout), lambda i: (i, 0)),
        ),
        compiler_params=pltpu.CompilerParams(
            dimension_semantics=("parallel",),
            vmem_limit_bytes=vmem_limit,
        ),
        cost_estimate=cost2,
    )(y_bf16, a.reshape(1, Cp), b.reshape(1, Cp))

    # drop row padding; (M, Cout) -> (N, Ho, Wo, Cout) -> NCHW (module layout)
    out = out_flat[:M].reshape(N, Ho, Wo, Cout)
    # TODO(synk): keep NHWC for downstream consumers to avoid this transpose.
    return out.transpose(0, 3, 1, 2)


# ---------------------------------------------------------------------------
# Pure-JAX reference (same mixed-precision conv + f32 BN/SiLU)
# ---------------------------------------------------------------------------
def base_conv_reference(x_nchw, weight, gamma, beta, *, ksize, stride,
                        compute_dtype=jnp.bfloat16):
    pad = (ksize - 1) // 2
    y = jax.lax.conv_general_dilated(
        x_nchw.astype(compute_dtype), weight.astype(compute_dtype),
        window_strides=(stride, stride),
        padding=((pad, pad), (pad, pad)),
        dimension_numbers=("NCHW", "OIHW", "NCHW"),
        preferred_element_type=jnp.float32,
    )
    mean = jnp.mean(y, axis=(0, 2, 3), keepdims=True)
    var = jnp.mean((y - mean) ** 2, axis=(0, 2, 3), keepdims=True)
    z = (y - mean) * jax.lax.rsqrt(var + _BN_EPS)
    z = z * gamma.reshape(1, -1, 1, 1) + beta.reshape(1, -1, 1, 1)
    return z * jax.nn.sigmoid(z)


if __name__ == "__main__":
    # BaseConv(in_channels=4, out_channels=8, ksize=3, stride=1, bias=False, act='silu')
    in_channels, out_channels, ksize, stride = 4, 8, 3, 1
    N, H, W = 2, 16, 16

    key = jax.random.PRNGKey(0)
    kx, kw, kg, kb = jax.random.split(key, 4)

    x = jax.random.normal(kx, (N, in_channels, H, W), dtype=jnp.float32)
    weight = 0.1 * jax.random.normal(
        kw, (out_channels, in_channels, ksize, ksize), dtype=jnp.float32)
    gamma = 1.0 + 0.1 * jax.random.normal(kg, (out_channels,), dtype=jnp.float32)
    beta = 0.1 * jax.random.normal(kb, (out_channels,), dtype=jnp.float32)

    out = base_conv_forward(x, weight, gamma, beta, ksize=ksize, stride=stride)
    out = jax.block_until_ready(out)
    assert out.shape == (N, out_channels, H, W), out.shape

    # check against the bf16-conv reference (kernel additionally stores the
    # conv intermediate in bf16, so allow ~1e-2)
    ref = base_conv_reference(x, weight, gamma, beta, ksize=ksize, stride=stride)
    assert jnp.allclose(out, ref, atol=1e-2, rtol=1e-2), float(
        jnp.max(jnp.abs(out - ref)))

    # sanity check against the full-f32 module semantics (mixed-precision tol)
    ref_f32 = base_conv_reference(x, weight, gamma, beta, ksize=ksize,
                                  stride=stride, compute_dtype=jnp.float32)
    assert jnp.allclose(out, ref_f32, atol=5e-2, rtol=5e-2), float(
        jnp.max(jnp.abs(out - ref_f32)))

    print("KERNEL_OK")
</pallas_src>

<mosaic_0001>
module attributes {stable_mosaic.version = 11 : i64} {
  func.func @conv_partial_kernel(%arg0: i32, %arg1: i32, %arg2: memref<512x128xbf16, #tpu.memory_space<vmem>>, %arg3: memref<128x128xbf16, #tpu.memory_space<vmem>>, %arg4: memref<512x128xbf16, #tpu.memory_space<vmem>>, %arg5: memref<1x1x128xf32, #tpu.memory_space<vmem>>, %arg6: memref<1x1x128xf32, #tpu.memory_space<vmem>>, %arg7: memref<512x128xf32, #tpu.memory_space<vmem>>) attributes {dimension_semantics = [#tpu.dimension_semantics<parallel>, #tpu.dimension_semantics<arbitrary>], iteration_bounds = array<i64: 1, 1>, scalar_prefetch = 0 : i64, scratch_operands = 1 : i64, tpu.core_type = #tpu.core_type<tc>, window_params = [{transform_indices = @transform_0, window_bounds = array<i64: 512, 128>}, {transform_indices = @transform_1, window_bounds = array<i64: 128, 128>}, {transform_indices = @transform_2, window_bounds = array<i64: 512, 128>}, {transform_indices = @transform_3, window_bounds = array<i64: 1, 1, 128>}, {transform_indices = @transform_4, window_bounds = array<i64: 1, 1, 128>}]} {
    %c0_i32 = arith.constant 0 : i32
    %0 = arith.cmpi eq, %arg1, %c0_i32 : i32
    %1 = arith.extui %0 : i1 to i32
    %c0_i32_0 = arith.constant 0 : i32
    %2 = arith.cmpi ne, %1, %c0_i32_0 : i32
    scf.if %2 {
      %cst_10 = arith.constant 0.000000e+00 : f32
      %12 = vector.broadcast %cst_10 : f32 to vector<512x128xf32>
      %c0_11 = arith.constant 0 : index
      %c0_12 = arith.constant 0 : index
      %13 = vector.load %arg7[%c0_11, %c0_12] : memref<512x128xf32, #tpu.memory_space<vmem>>, vector<512x128xf32>
      tpu.vector_store %arg7[%c0_11, %c0_12], %12 {strides = array<i32>} : memref<512x128xf32, #tpu.memory_space<vmem>>, vector<512x128xf32>,
    } else {
    }
    %c0 = arith.constant 0 : index
    %c0_1 = arith.constant 0 : index
    %3 = vector.load %arg7[%c0, %c0_1] : memref<512x128xf32, #tpu.memory_space<vmem>>, vector<512x128xf32>
    %c0_2 = arith.constant 0 : index
    %c0_3 = arith.constant 0 : index
    %4 = vector.load %arg2[%c0_2, %c0_3] : memref<512x128xbf16, #tpu.memory_space<vmem>>, vector<512x128xbf16>
    %c0_4 = arith.constant 0 : index
    %c0_5 = arith.constant 0 : index
    %5 = vector.load %arg3[%c0_4, %c0_5] : memref<128x128xbf16, #tpu.memory_space<vmem>>, vector<128x128xbf16>
    %cst = arith.constant dense<0.000000e+00> : vector<512x128xf32>
    %6 = tpu.matmul %4, %5, %cst {dimension_numbers = #tpu.dot_dimension_numbers<[1], [0], [0], [1], [0, 0, 1, 1], [], []>} : vector<512x128xbf16>, vector<128x128xbf16>, vector<512x128xf32> -> vector<512x128xf32>
    %7 = arith.addf %3, %6 : vector<512x128xf32>
    %c0_6 = arith.constant 0 : index
    %c0_7 = arith.constant 0 : index
    %8 = vector.load %arg7[%c0_6, %c0_7] : memref<512x128xf32, #tpu.memory_space<vmem>>, vector<512x128xf32>
    tpu.vector_store %arg7[%c0_6, %c0_7], %7 {strides = array<i32>} : memref<512x128xf32, #tpu.memory_space<vmem>>, vector<512x128xf32>,
    %c0_i32_8 = arith.constant 0 : i32
    %9 = arith.cmpi eq, %arg1, %c0_i32_8 : i32
    %10 = arith.extui %9 : i1 to i32
    %c0_i32_9 = arith.constant 0 : i32
    %11 = arith.cmpi ne, %10, %c0_i32_9 : i32
    scf.if %11 {
      %c0_10 = arith.constant 0 : index
      %c0_11 = arith.constant 0 : index
      %12 = vector.load %arg7[%c0_10, %c0_11] : memref<512x128xf32, #tpu.memory_space<vmem>>, vector<512x128xf32>
      %13 = arith.truncf %12 : vector<512x128xf32> to vector<512x128xbf16>
      %c0_12 = arith.constant 0 : index
      %c0_13 = arith.constant 0 : index
      %14 = vector.load %arg4[%c0_12, %c0_13] : memref<512x128xbf16, #tpu.memory_space<vmem>>, vector<512x128xbf16>
      tpu.vector_store %arg4[%c0_12, %c0_13], %13 {strides = array<i32>} : memref<512x128xbf16, #tpu.memory_space<vmem>>, vector<512x128xbf16>,
      %cst_14 = arith.constant dense<0.000000e+00> : vector<128xf32>
      %15 = vector.multi_reduction <add>, %12, %cst_14 [0] : vector<512x128xf32> to vector<128xf32>
      %16 = vector.shape_cast %15 : vector<128xf32> to vector<1x128xf32>
      %17 = vector.shape_cast %16 : vector<1x128xf32> to vector<1x1x128xf32>
      %c0_15 = arith.constant 0 : index
      %c0_16 = arith.constant 0 : index
      %c0_17 = arith.constant 0 : index
      %18 = vector.load %arg5[%c0_15, %c0_16, %c0_17] : memref<1x1x128xf32, #tpu.memory_space<vmem>>, vector<1x1x128xf32>
      tpu.vector_store %arg5[%c0_15, %c0_16, %c0_17], %17 {strides = array<i32>} : memref<1x1x128xf32, #tpu.memory_space<vmem>>, vector<1x1x128xf32>,
      %19 = arith.mulf %12, %12 : vector<512x128xf32>
      %cst_18 = arith.constant dense<0.000000e+00> : vector<128xf32>
      %20 = vector.multi_reduction <add>, %19, %cst_18 [0] : vector<512x128xf32> to vector<128xf32>
      %21 = vector.shape_cast %20 : vector<128xf32> to vector<1x128xf32>
      %22 = vector.shape_cast %21 : vector<1x128xf32> to vector<1x1x128xf32>
      %c0_19 = arith.constant 0 : index
      %c0_20 = arith.constant 0 : index
      %c0_21 = arith.constant 0 : index
      %23 = vector.load %arg6[%c0_19, %c0_20, %c0_21] : memref<1x1x128xf32, #tpu.memory_space<vmem>>, vector<1x1x128xf32>
      tpu.vector_store %arg6[%c0_19, %c0_20, %c0_21], %22 {strides = array<i32>} : memref<1x1x128xf32, #tpu.memory_space<vmem>>, vector<1x1x128xf32>,
    } else {
    }
    return
  }
  func.func @transform_0(%arg0: i32, %arg1: i32) -> (i32, i32) {
    %c0_i32 = arith.constant 0 : i32
    return %arg0, %arg1 : i32, i32
  }
  func.func @transform_1(%arg0: i32, %arg1: i32) -> (i32, i32) {
    %c0_i32 = arith.constant 0 : i32
    %c0_i32_0 = arith.constant 0 : i32
    return %arg1, %c0_i32 : i32, i32
  }
  func.func @transform_2(%arg0: i32, %arg1: i32) -> (i32, i32) {
    %c0_i32 = arith.constant 0 : i32
    %c0_i32_0 = arith.constant 0 : i32
    return %arg0, %c0_i32 : i32, i32
  }
  func.func @transform_3(%arg0: i32, %arg1: i32) -> (i32, i32, i32) {
    %c0_i32 = arith.constant 0 : i32
    %c0_i32_0 = arith.constant 0 : i32
    %c0_i32_1 = arith.constant 0 : i32
    return %arg0, %c0_i32, %c0_i32_0 : i32, i32, i32
  }
  func.func @transform_4(%arg0: i32, %arg1: i32) -> (i32, i32, i32) {
    %c0_i32 = arith.constant 0 : i32
    %c0_i32_0 = arith.constant 0 : i32
    %c0_i32_1 = arith.constant 0 : i32
    return %arg0, %c0_i32, %c0_i32_0 : i32, i32, i32
  }
}

</mosaic_0001>

<llo_original>
// kernel: tpu_custom_call.1
$region0: #{tpu_custom_call.1}
  #allocation0 [shape = 'u32[]', space=smem, size = 0x4, offset = 0x4, fixed_abs, tag = 'smem constant byte address 0x4 - core index']
  #allocation1 [shape = 'u32[144,128]{1,0:T(1,128)}', space=vmem, size = 0x12000, scoped, tag = 'internal scratch']
  #allocation2 [shape = 'f32[512,128]{1,0:T(8,128)}', space=vmem, size = 0x40000, scoped, tag = 'scratch operand']
  %s0 = inlined_call_operand.hbm [shape: bf16[512,128], index: 0, kind: input, shape index: {}]
  %s1 = inlined_call_operand.hbm [shape: bf16[128,128], index: 1, kind: input, shape index: {}]
  %s2 = inlined_call_operand.hbm [shape: bf16[512,128], index: 2, kind: output, shape index: {0}]
  %s3 = inlined_call_operand.hbm [shape: f32[1,1,128], index: 3, kind: output, shape index: {1}]
  %s4 = inlined_call_operand.hbm [shape: f32[1,1,128], index: 4, kind: output, shape index: {2}]
  %5 = xla_tuple %s2, %s3, %s4
  %s6 = sld [smem:[#allocation0]]
  $region50: #{tpu_custom_call.1} parent=0
    _
  %s8 = ssub.s32 1, %s6
  %s9 = scalar_select 0, %s8, %s6
  $region1: #{tpu_custom_call.1} parent=0
    #allocation3 [shape = 'u8[131072]{0}', space=vmem, size = 0x20000, scoped, tag = 'input window, operand 0, single buffered']
    #allocation4 [shape = 's32[1]{0}', space=sflag, size = 0x4, scoped, tag = 'scoped memory for tpu_custom_call.1']
    #allocation5 [shape = 's32[1]{0}', space=sflag, size = 0x4, scoped, tag = 'scoped memory for tpu_custom_call.1']
    #allocation6 [shape = 'u8[32768]{0}', space=vmem, size = 0x8000, scoped, tag = 'input window, operand 1, single buffered']
    #allocation7 [shape = 's32[1]{0}', space=sflag, size = 0x4, scoped, tag = 'scoped memory for tpu_custom_call.1']
    #allocation8 [shape = 'u8[131072]{0}', space=vmem, size = 0x20000, scoped, tag = 'output window, operand 0, single buffered']
    #allocation9 [shape = 'u8[512]{0}', space=vmem, size = 0x400, scoped, tag = 'output window, operand 1, single buffered']
    #allocation10 [shape = 's32[1]{0}', space=sflag, size = 0x4, scoped, tag = 'scoped memory for tpu_custom_call.1']
    #allocation11 [shape = 'u8[512]{0}', space=vmem, size = 0x400, scoped, tag = 'output window, operand 2, single buffered']
    %10 = vsyncpa [#allocation4], 0
    %11 = vsyncpa [#allocation7], 0
    %12 = vsyncpa [#allocation5], 0
    %13 = vsyncpa [#allocation10], 0
    // Predicated region
    $region2: #{tpu_custom_call.1} parent=1 // pred_check
      _
    $region3: #{tpu_custom_call.1} parent=1 // pred_check_branch
      %15 = sbr.rel (0) target = $region5
    $region4: #{tpu_custom_call.1} parent=1 // pred_region
      %s17 = ssub.s32 4096, 4096
      %18 = vsyncadd [#allocation4], %s17
      %s19 = sshll.u32 [#allocation3], 4
      %s20 = int_to_ptr.vmem [resolvable:$true] %s19
      %25 = dma.hbm_to_vmem [thread:$0]  %s0, 4096, %s20, [#allocation4], 64, 64, 4
    $region5: #{tpu_custom_call.1} parent=1 // pred_fallthru
      _
    // Predicated region
    $region6: #{tpu_custom_call.1} parent=1 // pred_check
      _
    $region7: #{tpu_custom_call.1} parent=1 // pred_check_branch
      %27 = sbr.rel (0) target = $region9
    $region8: #{tpu_custom_call.1} parent=1 // pred_region
      %s29 = ssub.s32 1024, 1024
      %30 = vsyncadd [#allocation7], %s29
      %s31 = sshll.u32 [#allocation6], 4
      %s32 = int_to_ptr.vmem [resolvable:$true] %s31
      %37 = dma.hbm_to_vmem [thread:$0]  %s1, 1024, %s32, [#allocation7], 64, 64, 4
    $region9: #{tpu_custom_call.1} parent=1 // pred_fallthru
      _
    // Predicated region
    $region10: #{tpu_custom_call.1} parent=1 // pred_check
      _
    $region11: #{tpu_custom_call.1} parent=1 // pred_check_branch
      %39 = sbr.rel (0) target = $region13
    $region12: #{tpu_custom_call.1} parent=1 // pred_region
      %40 = dma.done [#allocation4], 4096
    $region13: #{tpu_custom_call.1} parent=1 // pred_fallthru
      _
    // Predicated region
    $region14: #{tpu_custom_call.1} parent=1 // pred_check
      _
    $region15: #{tpu_custom_call.1} parent=1 // pred_check_branch
      %42 = sbr.rel (0) target = $region17
    $region16: #{tpu_custom_call.1} parent=1 // pred_region
      %43 = dma.done [#allocation7], 1024
    $region17: #{tpu_custom_call.1} parent=1 // pred_fallthru
      _
    %p45 = scmp.eq.s32.totalorder 0, 0
    // Predicated region
    $region18: #{tpu_custom_call.1} parent=1 // pred_check
      %p46 = pneg %p45
    $region19: #{tpu_custom_call.1} parent=1 // pred_check_branch
      %48 = sbr.rel (%p46) target = $region21
    $region20: #{tpu_custom_call.1} parent=1 // pred_region
      %49 = vst [vmem:[#allocation2] sm:$0xff] 0.0
      %50 = vst [vmem:[#allocation2 + $0x8] sm:$0xff] 0.0
      %51 = vst [vmem:[#allocation2 + $0x10] sm:$0xff] 0.0
      %52 = vst [vmem:[#allocation2 + $0x18] sm:$0xff] 0.0
      %53 = vst [vmem:[#allocation2 + $0x20] sm:$0xff] 0.0
      %54 = vst [vmem:[#allocation2 + $0x28] sm:$0xff] 0.0
      %55 = vst [vmem:[#allocation2 + $0x30] sm:$0xff] 0.0
      %56 = vst [vmem:[#allocation2 + $0x38] sm:$0xff] 0.0
      %57 = vst [vmem:[#allocation2 + $0x40] sm:$0xff] 0.0
      %58 = vst [vmem:[#allocation2 + $0x48] sm:$0xff] 0.0
      %59 = vst [vmem:[#allocation2 + $0x50] sm:$0xff] 0.0
      %60 = vst [vmem:[#allocation2 + $0x58] sm:$0xff] 0.0
      %61 = vst [vmem:[#allocation2 + $0x60] sm:$0xff] 0.0
      %62 = vst [vmem:[#allocation2 + $0x68] sm:$0xff] 0.0
      %63 = vst [vmem:[#allocation2 + $0x70] sm:$0xff] 0.0
      %64 = vst [vmem:[#allocation2 + $0x78] sm:$0xff] 0.0
      %65 = vst [vmem:[#allocation2 + $0x80] sm:$0xff] 0.0
      %66 = vst [vmem:[#allocation2 + $0x88] sm:$0xff] 0.0
      %67 = vst [vmem:[#allocation2 + $0x90] sm:$0xff] 0.0
      %68 = vst [vmem:[#allocation2 + $0x98] sm:$0xff] 0.0
      %69 = vst [vmem:[#allocation2 + $0xa0] sm:$0xff] 0.0
      %70 = vst [vmem:[#allocation2 + $0xa8] sm:$0xff] 0.0
      %71 = vst [vmem:[#allocation2 + $0xb0] sm:$0xff] 0.0
      %72 = vst [vmem:[#allocation2 + $0xb8] sm:$0xff] 0.0
      %73 = vst [vmem:[#allocation2 + $0xc0] sm:$0xff] 0.0
      %74 = vst [vmem:[#allocation2 + $0xc8] sm:$0xff] 0.0
      %75 = vst [vmem:[#allocation2 + $0xd0] sm:$0xff] 0.0
      %76 = vst [vmem:[#allocation2 + $0xd8] sm:$0xff] 0.0
      %77 = vst [vmem:[#allocation2 + $0xe0] sm:$0xff] 0.0
      %78 = vst [vmem:[#allocation2 + $0xe8] sm:$0xff] 0.0
      %79 = vst [vmem:[#allocation2 + $0xf0] sm:$0xff] 0.0
      %80 = vst [vmem:[#allocation2 + $0xf8] sm:$0xff] 0.0
      %81 = vst [vmem:[#allocation2 + $0x100] sm:$0xff] 0.0
      %82 = vst [vmem:[#allocation2 + $0x108] sm:$0xff] 0.0
      %83 = vst [vmem:[#allocation2 + $0x110] sm:$0xff] 0.0
      %84 = vst [vmem:[#allocation2 + $0x118] sm:$0xff] 0.0
      %85 = vst [vmem:[#allocation2 + $0x120] sm:$0xff] 0.0
      %86 = vst [vmem:[#allocation2 + $0x128] sm:$0xff] 0.0
      %87 = vst [vmem:[#allocation2 + $0x130] sm:$0xff] 0.0
      %88 = vst [vmem:[#allocation2 + $0x138] sm:$0xff] 0.0
      %89 = vst [vmem:[#allocation2 + $0x140] sm:$0xff] 0.0
      %90 = vst [vmem:[#allocation2 + $0x148] sm:$0xff] 0.0
      %91 = vst [vmem:[#allocation2 + $0x150] sm:$0xff] 0.0
      %92 = vst [vmem:[#allocation2 + $0x158] sm:$0xff] 0.0
      %93 = vst [vmem:[#allocation2 + $0x160] sm:$0xff] 0.0
      %94 = vst [vmem:[#allocation2 + $0x168] sm:$0xff] 0.0
      %95 = vst [vmem:[#allocation2 + $0x170] sm:$0xff] 0.0
      %96 = vst [vmem:[#allocation2 + $0x178] sm:$0xff] 0.0
      %97 = vst [vmem:[#allocation2 + $0x180] sm:$0xff] 0.0
      %98 = vst [vmem:[#allocation2 + $0x188] sm:$0xff] 0.0
      %99 = vst [vmem:[#allocation2 + $0x190] sm:$0xff] 0.0
      %100 = vst [vmem:[#allocation2 + $0x198] sm:$0xff] 0.0
      %101 = vst [vmem:[#allocation2 + $0x1a0] sm:$0xff] 0.0
      %102 = vst [vmem:[#allocation2 + $0x1a8] sm:$0xff] 0.0
      %103 = vst [vmem:[#allocation2 + $0x1b0] sm:$0xff] 0.0
      %104 = vst [vmem:[#allocation2 + $0x1b8] sm:$0xff] 0.0
      %105 = vst [vmem:[#allocation2 + $0x1c0] sm:$0xff] 0.0
      %106 = vst [vmem:[#allocation2 + $0x1c8] sm:$0xff] 0.0
      %107 = vst [vmem:[#allocation2 + $0x1d0] sm:$0xff] 0.0
      %108 = vst [vmem:[#allocation2 + $0x1d8] sm:$0xff] 0.0
      %109 = vst [vmem:[#allocation2 + $0x1e0] sm:$0xff] 0.0
      %110 = vst [vmem:[#allocation2 + $0x1e8] sm:$0xff] 0.0
      %111 = vst [vmem:[#allocation2 + $0x1f0] sm:$0xff] 0.0
      %112 = vst [vmem:[#allocation2 + $0x1f8] sm:$0xff] 0.0
    $region21: #{tpu_custom_call.1} parent=1 // pred_fallthru
      _
    %v113 = vld [vmem:[#allocation2] sm:$0xff]
    %v114 = vld [vmem:[#allocation2 + $0x8] sm:$0xff]
    %v115 = vld [vmem:[#allocation2 + $0x10] sm:$0xff]
    %v116 = vld [vmem:[#allocation2 + $0x18] sm:$0xff]
    %v117 = vld [vmem:[#allocation2 + $0x20] sm:$0xff]
    %v118 = vld [vmem:[#allocation2 + $0x28] sm:$0xff]
    %v119 = vld [vmem:[#allocation2 + $0x30] sm:$0xff]
    %v120 = vld [vmem:[#allocation2 + $0x38] sm:$0xff]
    %v121 = vld [vmem:[#allocation2 + $0x40] sm:$0xff]
    %v122 = vld [vmem:[#allocation2 + $0x48] sm:$0xff]
    %v123 = vld [vmem:[#allocation2 + $0x50] sm:$0xff]
    %v124 = vld [vmem:[#allocation2 + $0x58] sm:$0xff]
    %v125 = vld [vmem:[#allocation2 + $0x60] sm:$0xff]
    %v126 = vld [vmem:[#allocation2 + $0x68] sm:$0xff]
    %v127 = vld [vmem:[#allocation2 + $0x70] sm:$0xff]
    %v128 = vld [vmem:[#allocation2 + $0x78] sm:$0xff]
    %v129 = vld [vmem:[#allocation2 + $0x80] sm:$0xff]
    %v130 = vld [vmem:[#allocation2 + $0x88] sm:$0xff]
    %v131 = vld [vmem:[#allocation2 + $0x90] sm:$0xff]
    %v132 = vld [vmem:[#allocation2 + $0x98] sm:$0xff]
    %v133 = vld [vmem:[#allocation2 + $0xa0] sm:$0xff]
    %v134 = vld [vmem:[#allocation2 + $0xa8] sm:$0xff]
    %v135 = vld [vmem:[#allocation2 + $0xb0] sm:$0xff]
    %v136 = vld [vmem:[#allocation2 + $0xb8] sm:$0xff]
    %v137 = vld [vmem:[#allocation2 + $0xc0] sm:$0xff]
    %v138 = vld [vmem:[#allocation2 + $0xc8] sm:$0xff]
    %v139 = vld [vmem:[#allocation2 + $0xd0] sm:$0xff]
    %v140 = vld [vmem:[#allocation2 + $0xd8] sm:$0xff]
    %v141 = vld [vmem:[#allocation2 + $0xe0] sm:$0xff]
    %v142 = vld [vmem:[#allocation2 + $0xe8] sm:$0xff]
    %v143 = vld [vmem:[#allocation2 + $0xf0] sm:$0xff]
    %v144 = vld [vmem:[#allocation2 + $0xf8] sm:$0xff]
    %v145 = vld [vmem:[#allocation2 + $0x100] sm:$0xff]
    %v146 = vld [vmem:[#allocation2 + $0x108] sm:$0xff]
    %v147 = vld [vmem:[#allocation2 + $0x110] sm:$0xff]
    %v148 = vld [vmem:[#allocation2 + $0x118] sm:$0xff]
    %v149 = vld [vmem:[#allocation2 + $0x120] sm:$0xff]
    %v150 = vld [vmem:[#allocation2 + $0x128] sm:$0xff]
    %v151 = vld [vmem:[#allocation2 + $0x130] sm:$0xff]
    %v152 = vld [vmem:[#allocation2 + $0x138] sm:$0xff]
    %v153 = vld [vmem:[#allocation2 + $0x140] sm:$0xff]
    %v154 = vld [vmem:[#allocation2 + $0x148] sm:$0xff]
    %v155 = vld [vmem:[#allocation2 + $0x150] sm:$0xff]
    %v156 = vld [vmem:[#allocation2 + $0x158] sm:$0xff]
    %v157 = vld [vmem:[#allocation2 + $0x160] sm:$0xff]
    %v158 = vld [vmem:[#allocation2 + $0x168] sm:$0xff]
    %v159 = vld [vmem:[#allocation2 + $0x170] sm:$0xff]
    %v160 = vld [vmem:[#allocation2 + $0x178] sm:$0xff]
    %v161 = vld [vmem:[#allocation2 + $0x180] sm:$0xff]
    %v162 = vld [vmem:[#allocation2 + $0x188] sm:$0xff]
    %v163 = vld [vmem:[#allocation2 + $0x190] sm:$0xff]
    %v164 = vld [vmem:[#allocation2 + $0x198] sm:$0xff]
    %v165 = vld [vmem:[#allocation2 + $0x1a0] sm:$0xff]
    %v166 = vld [vmem:[#allocation2 + $0x1a8] sm:$0xff]
    %v167 = vld [vmem:[#allocation2 + $0x1b0] sm:$0xff]
    %v168 = vld [vmem:[#allocation2 + $0x1b8] sm:$0xff]
    %v169 = vld [vmem:[#allocation2 + $0x1c0] sm:$0xff]
    %v170 = vld [vmem:[#allocation2 + $0x1c8] sm:$0xff]
    %v171 = vld [vmem:[#allocation2 + $0x1d0] sm:$0xff]
    %v172 = vld [vmem:[#allocation2 + $0x1d8] sm:$0xff]
    %v173 = vld [vmem:[#allocation2 + $0x1e0] sm:$0xff]
    %v174 = vld [vmem:[#allocation2 + $0x1e8] sm:$0xff]
    %v175 = vld [vmem:[#allocation2 + $0x1f0] sm:$0xff]
    %v176 = vld [vmem:[#allocation2 + $0x1f8] sm:$0xff]
    %v177 = vld [vmem:[#allocation3] sm:$0xf]
    %v178 = vld [vmem:[#allocation3 + $0x4] sm:$0xf]
    %v179 = vld [vmem:[#allocation3 + $0x8] sm:$0xf]
    %v180 = vld [vmem:[#allocation3 + $0xc] sm:$0xf]
    %v181 = vld [vmem:[#allocation3 + $0x10] sm:$0xf]
    %v182 = vld [vmem:[#allocation3 + $0x14] sm:$0xf]
    %v183 = vld [vmem:[#allocation3 + $0x18] sm:$0xf]
    %v184 = vld [vmem:[#allocation3 + $0x1c] sm:$0xf]
    %v185 = vld [vmem:[#allocation3 + $0x20] sm:$0xf]
    %v186 = vld [vmem:[#allocation3 + $0x24] sm:$0xf]
    %v187 = vld [vmem:[#allocation3 + $0x28] sm:$0xf]
    %v188 = vld [vmem:[#allocation3 + $0x2c] sm:$0xf]
    %v189 = vld [vmem:[#allocation3 + $0x30] sm:$0xf]
    %v190 = vld [vmem:[#allocation3 + $0x34] sm:$0xf]
    %v191 = vld [vmem:[#allocation3 + $0x38] sm:$0xf]
    %v192 = vld [vmem:[#allocation3 + $0x3c] sm:$0xf]
    %v193 = vld [vmem:[#allocation3 + $0x40] sm:$0xf]
    %v194 = vld [vmem:[#allocation3 + $0x44] sm:$0xf]
    %v195 = vld [vmem:[#allocation3 + $0x48] sm:$0xf]
    %v196 = vld [vmem:[#allocation3 + $0x4c] sm:$0xf]
    %v197 = vld [vmem:[#allocation3 + $0x50] sm:$0xf]
    %v198 = vld [vmem:[#allocation3 + $0x54] sm:$0xf]
    %v199 = vld [vmem:[#allocation3 + $0x58] sm:$0xf]
    %v200 = vld [vmem:[#allocation3 + $0x5c] sm:$0xf]
    %v201 = vld [vmem:[#allocation3 + $0x60] sm:$0xf]
    %v202 = vld [vmem:[#allocation3 + $0x64] sm:$0xf]
    %v203 = vld [vmem:[#allocation3 + $0x68] sm:$0xf]
    %v204 = vld [vmem:[#allocation3 + $0x6c] sm:$0xf]
    %v205 = vld [vmem:[#allocation3 + $0x70] sm:$0xf]
    %v206 = vld [vmem:[#allocation3 + $0x74] sm:$0xf]
    %v207 = vld [vmem:[#allocation3 + $0x78] sm:$0xf]
    %v208 = vld [vmem:[#allocation3 + $0x7c] sm:$0xf]
    %v209 = vld [vmem:[#allocation3 + $0x80] sm:$0xf]
    %v210 = vld [vmem:[#allocation3 + $0x84] sm:$0xf]
    %v211 = vld [vmem:[#allocation3 + $0x88] sm:$0xf]
    %v212 = vld [vmem:[#allocation3 + $0x8c] sm:$0xf]
    %v213 = vld [vmem:[#allocation3 + $0x90] sm:$0xf]
    %v214 = vld [vmem:[#allocation3 + $0x94] sm:$0xf]
    %v215 = vld [vmem:[#allocation3 + $0x98] sm:$0xf]
    %v216 = vld [vmem:[#allocation3 + $0x9c] sm:$0xf]
    %v217 = vld [vmem:[#allocation3 + $0xa0] sm:$0xf]
    %v218 = vld [vmem:[#allocation3 + $0xa4] sm:$0xf]
    %v219 = vld [vmem:[#allocation3 + $0xa8] sm:$0xf]
    %v220 = vld [vmem:[#allocation3 + $0xac] sm:$0xf]
    %v221 = vld [vmem:[#allocation3 + $0xb0] sm:$0xf]
    %v222 = vld [vmem:[#allocation3 + $0xb4] sm:$0xf]
    %v223 = vld [vmem:[#allocation3 + $0xb8] sm:$0xf]
    %v224 = vld [vmem:[#allocation3 + $0xbc] sm:$0xf]
    %v225 = vld [vmem:[#allocation3 + $0xc0] sm:$0xf]
    %v226 = vld [vmem:[#allocation3 + $0xc4] sm:$0xf]
    %v227 = vld [vmem:[#allocation3 + $0xc8] sm:$0xf]
    %v228 = vld [vmem:[#allocation3 + $0xcc] sm:$0xf]
    %v229 = vld [vmem:[#allocation3 + $0xd0] sm:$0xf]
    %v230 = vld [vmem:[#allocation3 + $0xd4] sm:$0xf]
    %v231 = vld [vmem:[#allocation3 + $0xd8] sm:$0xf]
    %v232 = vld [vmem:[#allocation3 + $0xdc] sm:$0xf]
    %v233 = vld [vmem:[#allocation3 + $0xe0] sm:$0xf]
    %v234 = vld [vmem:[#allocation3 + $0xe4] sm:$0xf]
    %v235 = vld [vmem:[#allocation3 + $0xe8] sm:$0xf]
    %v236 = vld [vmem:[#allocation3 + $0xec] sm:$0xf]
    %v237 = vld [vmem:[#allocation3 + $0xf0] sm:$0xf]
    %v238 = vld [vmem:[#allocation3 + $0xf4] sm:$0xf]
    %v239 = vld [vmem:[#allocation3 + $0xf8] sm:$0xf]
    %v240 = vld [vmem:[#allocation3 + $0xfc] sm:$0xf]
    %v241 = vld [vmem:[#allocation6] sm:$0xf]
    %v242 = vld [vmem:[#allocation6 + $0x4] sm:$0xf]
    %v243 = vld [vmem:[#allocation6 + $0x8] sm:$0xf]
    %v244 = vld [vmem:[#allocation6 + $0xc] sm:$0xf]
    %v245 = vld [vmem:[#allocation6 + $0x10] sm:$0xf]
    %v246 = vld [vmem:[#allocation6 + $0x14] sm:$0xf]
    %v247 = vld [vmem:[#allocation6 + $0x18] sm:$0xf]
    %v248 = vld [vmem:[#allocation6 + $0x1c] sm:$0xf]
    %v249 = vld [vmem:[#allocation6 + $0x20] sm:$0xf]
    %v250 = vld [vmem:[#allocation6 + $0x24] sm:$0xf]
    %v251 = vld [vmem:[#allocation6 + $0x28] sm:$0xf]
    %v252 = vld [vmem:[#allocation6 + $0x2c] sm:$0xf]
    %v253 = vld [vmem:[#allocation6 + $0x30] sm:$0xf]
    %v254 = vld [vmem:[#allocation6 + $0x34] sm:$0xf]
    %v255 = vld [vmem:[#allocation6 + $0x38] sm:$0xf]
    %v256 = vld [vmem:[#allocation6 + $0x3c] sm:$0xf]
    %v321 = vunpack.c.l.b16 %v177
    %v322 = vunpack.c.l.b16 %v178
    %v323 = vunpack.c.l.b16 %v179
    %v324 = vunpack.c.l.b16 %v180
    %v325 = vunpack.c.l.b16 %v181
    %v326 = vunpack.c.l.b16 %v182
    %v327 = vunpack.c.l.b16 %v183
    %v328 = vunpack.c.l.b16 %v184
    %v329 = vunpack.c.l.b16 %v185
    %v330 = vunpack.c.l.b16 %v186
    %v331 = vunpack.c.l.b16 %v187
    %v332 = vunpack.c.l.b16 %v188
    %v333 = vunpack.c.l.b16 %v189
    %v334 = vunpack.c.l.b16 %v190
    %v335 = vunpack.c.l.b16 %v191
    %v336 = vunpack.c.l.b16 %v192
    %v337 = vunpack.c.l.b16 %v193
    %v338 = vunpack.c.l.b16 %v194
    %v339 = vunpack.c.l.b16 %v195
    %v340 = vunpack.c.l.b16 %v196
    %v341 = vunpack.c.l.b16 %v197
    %v342 = vunpack.c.l.b16 %v198
    %v343 = vunpack.c.l.b16 %v199
    %v344 = vunpack.c.l.b16 %v200
    %v345 = vunpack.c.l.b16 %v201
    %v346 = vunpack.c.l.b16 %v202
    %v347 = vunpack.c.l.b16 %v203
    %v348 = vunpack.c.l.b16 %v204
    %v349 = vunpack.c.l.b16 %v205
    %v350 = vunpack.c.l.b16 %v206
    %v351 = vunpack.c.l.b16 %v207
    %v352 = vunpack.c.l.b16 %v208
    %v353 = vunpack.c.l.b16 %v209
    %v354 = vunpack.c.l.b16 %v210
    %v355 = vunpack.c.l.b16 %v211
    %v356 = vunpack.c.l.b16 %v212
    %v357 = vunpack.c.l.b16 %v213
    %v358 = vunpack.c.l.b16 %v214
    %v359 = vunpack.c.l.b16 %v215
    %v360 = vunpack.c.l.b16 %v216
    %v361 = vunpack.c.l.b16 %v217
    %v362 = vunpack.c.l.b16 %v218
    %v363 = vunpack.c.l.b16 %v219
    %v364 = vunpack.c.l.b16 %v220
    %v365 = vunpack.c.l.b16 %v221
    %v366 = vunpack.c.l.b16 %v222
    %v367 = vunpack.c.l.b16 %v223
    %v368 = vunpack.c.l.b16 %v224
    %v369 = vunpack.c.l.b16 %v225
    %v370 = vunpack.c.l.b16 %v226
    %v371 = vunpack.c.l.b16 %v227
    %v372 = vunpack.c.l.b16 %v228
    %v373 = vunpack.c.l.b16 %v229
    %v374 = vunpack.c.l.b16 %v230
    %v375 = vunpack.c.l.b16 %v231
    %v376 = vunpack.c.l.b16 %v232
    %v377 = vunpack.c.l.b16 %v233
    %v378 = vunpack.c.l.b16 %v234
    %v379 = vunpack.c.l.b16 %v235
    %v380 = vunpack.c.l.b16 %v236
    %v381 = vunpack.c.l.b16 %v237
    %v382 = vunpack.c.l.b16 %v238
    %v383 = vunpack.c.l.b16 %v239
    %v384 = vunpack.c.l.b16 %v240
    %v385 = vpack.c.b16 %v322, %v321
    %v386 = vpack.c.b16 %v324, %v323
    %v387 = vpack.c.b16 %v326, %v325
    %v388 = vpack.c.b16 %v328, %v327
    %v389 = vpack.c.b16 %v330, %v329
    %v390 = vpack.c.b16 %v332, %v331
    %v391 = vpack.c.b16 %v334, %v333
    %v392 = vpack.c.b16 %v336, %v335
    %v393 = vpack.c.b16 %v338, %v337
    %v394 = vpack.c.b16 %v340, %v339
    %v395 = vpack.c.b16 %v342, %v341
    %v396 = vpack.c.b16 %v344, %v343
    %v397 = vpack.c.b16 %v346, %v345
    %v398 = vpack.c.b16 %v348, %v347
    %v399 = vpack.c.b16 %v350, %v349
    %v400 = vpack.c.b16 %v352, %v351
    %v401 = vpack.c.b16 %v354, %v353
    %v402 = vpack.c.b16 %v356, %v355
    %v403 = vpack.c.b16 %v358, %v357
    %v404 = vpack.c.b16 %v360, %v359
    %v405 = vpack.c.b16 %v362, %v361
    %v406 = vpack.c.b16 %v364, %v363
    %v407 = vpack.c.b16 %v366, %v365
    %v408 = vpack.c.b16 %v368, %v367
    %v409 = vpack.c.b16 %v370, %v369
    %v410 = vpack.c.b16 %v372, %v371
    %v411 = vpack.c.b16 %v374, %v373
    %v412 = vpack.c.b16 %v376, %v375
    %v413 = vpack.c.b16 %v378, %v377
    %v414 = vpack.c.b16 %v380, %v379
    %v415 = vpack.c.b16 %v382, %v381
    %v416 = vpack.c.b16 %v384, %v383
    %v465 = vunpack.c.l.b16 %v241
    %v466 = vunpack.c.l.b16 %v242
    %v467 = vunpack.c.l.b16 %v243
    %v468 = vunpack.c.l.b16 %v244
    %v469 = vunpack.c.l.b16 %v245
    %v470 = vunpack.c.l.b16 %v246
    %v471 = vunpack.c.l.b16 %v247
    %v472 = vunpack.c.l.b16 %v248
    %v473 = vunpack.c.l.b16 %v249
    %v474 = vunpack.c.l.b16 %v250
    %v475 = vunpack.c.l.b16 %v251
    %v476 = vunpack.c.l.b16 %v252
    %v477 = vunpack.c.l.b16 %v253
    %v478 = vunpack.c.l.b16 %v254
    %v479 = vunpack.c.l.b16 %v255
    %v480 = vunpack.c.l.b16 %v256
    %v481 = vpack.c.b16 %v466, %v465
    %v482 = vpack.c.b16 %v468, %v467
    %v483 = vpack.c.b16 %v470, %v469
    %v484 = vpack.c.b16 %v472, %v471
    %v485 = vpack.c.b16 %v474, %v473
    %v486 = vpack.c.b16 %v476, %v475
    %v487 = vpack.c.b16 %v478, %v477
    %v488 = vpack.c.b16 %v480, %v479
    %497 = vmatprep.subr.bf16.mxu0 0
    %498 = vmatpush1.bf16.msra.mxu0 %v488
    %499 = vmatprep.subr.bf16.mxu0 0
    %500 = vmatpush1.bf16.msra.mxu0 %v487
    %501 = vmatprep.subr.bf16.mxu0 0
    %502 = vmatpush1.bf16.msra.mxu0 %v486
    %503 = vmatprep.subr.bf16.mxu0 0
    %504 = vmatpush1.bf16.msra.mxu0 %v485
    %505 = vmatprep.subr.bf16.mxu0 0
    %506 = vmatpush1.bf16.msra.mxu0 %v484
    %507 = vmatprep.subr.bf16.mxu0 0
    %508 = vmatpush1.bf16.msra.mxu0 %v483
    %509 = vmatprep.subr.bf16.mxu0 0
    %510 = vmatpush1.bf16.msra.mxu0 %v482
    %511 = vmatprep.subr.bf16.mxu0 0
    %512 = vmatpush1.bf16.msra.mxu0 %v481
    %513 = vmatprep.subr.bf16.mxu0 0
    %514 = vmatpush2.bf16.msra.mxu0 0
    %515 = vmatprep.subr.bf16.mxu0 0
    %516 = vmatpush2.bf16.msra.mxu0 0
    %517 = vmatprep.subr.bf16.mxu0 0
    %518 = vmatpush2.bf16.msra.mxu0 0
    %519 = vmatprep.subr.bf16.mxu0 0
    %520 = vmatpush2.bf16.msra.mxu0 0
    %521 = vmatprep.subr.bf16.mxu0 0
    %522 = vmatpush2.bf16.msra.mxu0 0
    %523 = vmatprep.subr.bf16.mxu0 0
    %524 = vmatpush2.bf16.msra.mxu0 0
    %525 = vmatprep.subr.bf16.mxu0 0
    %526 = vmatpush2.bf16.msra.mxu0 0
    %527 = vmatprep.subr.bf16.mxu0 0
    %528 = vmatpush2.bf16.msra.mxu0 0
    %529 = vmatprep.mubr.bf16.mxu0 0
    %530 = vmatmul.mubr.bf16.gmra.mxu0 %v385
    %v531 = vpop.f32.mrf.mxu0
    %v532 = vadd.f32 0.0, %v531
    %v533 = vpop.f32.mrf.mxu0
    %v534 = vpop.f32.mrf.mxu0
    %v535 = vadd.f32 0.0, %v534
    %v536 = vpop.f32.mrf.mxu0
    %537 = vmatprep.mubr.bf16.mxu0 0
    %538 = vmatmul.mubr.bf16.gmra.mxu0 %v386
    %v539 = vpop.f32.mrf.mxu0
    %v540 = vadd.f32 0.0, %v539
    %v541 = vpop.f32.mrf.mxu0
    %v542 = vpop.f32.mrf.mxu0
    %v543 = vadd.f32 0.0, %v542
    %v544 = vpop.f32.mrf.mxu0
    %545 = vmatprep.mubr.bf16.mxu0 0
    %546 = vmatmul.mubr.bf16.gmra.mxu0 %v387
    %v547 = vpop.f32.mrf.mxu0
    %v548 = vadd.f32 0.0, %v547
    %v549 = vpop.f32.mrf.mxu0
    %v550 = vpop.f32.mrf.mxu0
    %v551 = vadd.f32 0.0, %v550
    %v552 = vpop.f32.mrf.mxu0
    %553 = vmatprep.mubr.bf16.mxu0 0
    %554 = vmatmul.mubr.bf16.gmra.mxu0 %v388
    %v555 = vpop.f32.mrf.mxu0
    %v556 = vadd.f32 0.0, %v555
    %v557 = vpop.f32.mrf.mxu0
    %v558 = vpop.f32.mrf.mxu0
    %v559 = vadd.f32 0.0, %v558
    %v560 = vpop.f32.mrf.mxu0
    %561 = vmatprep.mubr.bf16.mxu0 0
    %562 = vmatmul.mubr.bf16.gmra.mxu0 %v389
    %v563 = vpop.f32.mrf.mxu0
    %v564 = vadd.f32 0.0, %v563
    %v565 = vpop.f32.mrf.mxu0
    %v566 = vpop.f32.mrf.mxu0
    %v567 = vadd.f32 0.0, %v566
    %v568 = vpop.f32.mrf.mxu0
    %569 = vmatprep.mubr.bf16.mxu0 0
    %570 = vmatmul.mubr.bf16.gmra.mxu0 %v390
    %v571 = vpop.f32.mrf.mxu0
    %v572 = vadd.f32 0.0, %v571
    %v573 = vpop.f32.mrf.mxu0
    %v574 = vpop.f32.mrf.mxu0
    %v575 = vadd.f32 0.0, %v574
    %v576 = vpop.f32.mrf.mxu0
    %577 = vmatprep.mubr.bf16.mxu0 0
    %578 = vmatmul.mubr.bf16.gmra.mxu0 %v391
    %v579 = vpop.f32.mrf.mxu0
    %v580 = vadd.f32 0.0, %v579
    %v581 = vpop.f32.mrf.mxu0
    %v582 = vpop.f32.mrf.mxu0
    %v583 = vadd.f32 0.0, %v582
    %v584 = vpop.f32.mrf.mxu0
    %585 = vmatprep.mubr.bf16.mxu0 0
    %586 = vmatmul.mubr.bf16.gmra.mxu0 %v392
    %v587 = vpop.f32.mrf.mxu0
    %v588 = vadd.f32 0.0, %v587
    %v589 = vpop.f32.mrf.mxu0
    %v590 = vpop.f32.mrf.mxu0
    %v591 = vadd.f32 0.0, %v590
    %v592 = vpop.f32.mrf.mxu0
    %593 = vmatprep.mubr.bf16.mxu0 0
    %594 = vmatmul.mubr.bf16.gmra.mxu0 %v393
    %v595 = vpop.f32.mrf.mxu0
    %v596 = vadd.f32 0.0, %v595
    %v597 = vpop.f32.mrf.mxu0
    %v598 = vpop.f32.mrf.mxu0
    %v599 = vadd.f32 0.0, %v598
    %v600 = vpop.f32.mrf.mxu0
    %601 = vmatprep.mubr.bf16.mxu0 0
    %602 = vmatmul.mubr.bf16.gmra.mxu0 %v394
    %v603 = vpop.f32.mrf.mxu0
    %v604 = vadd.f32 0.0, %v603
    %v605 = vpop.f32.mrf.mxu0
    %v606 = vpop.f32.mrf.mxu0
    %v607 = vadd.f32 0.0, %v606
    %v608 = vpop.f32.mrf.mxu0
    %609 = vmatprep.mubr.bf16.mxu0 0
    %610 = vmatmul.mubr.bf16.gmra.mxu0 %v395
    %v611 = vpop.f32.mrf.mxu0
    %v612 = vadd.f32 0.0, %v611
    %v613 = vpop.f32.mrf.mxu0
    %v614 = vpop.f32.mrf.mxu0
    %v615 = vadd.f32 0.0, %v614
    %v616 = vpop.f32.mrf.mxu0
    %617 = vmatprep.mubr.bf16.mxu0 0
    %618 = vmatmul.mubr.bf16.gmra.mxu0 %v396
    %v619 = vpop.f32.mrf.mxu0
    %v620 = vadd.f32 0.0, %v619
    %v621 = vpop.f32.mrf.mxu0
    %v622 = vpop.f32.mrf.mxu0
    %v623 = vadd.f32 0.0, %v622
    %v624 = vpop.f32.mrf.mxu0
    %625 = vmatprep.mubr.bf16.mxu0 0
    %626 = vmatmul.mubr.bf16.gmra.mxu0 %v397
    %v627 = vpop.f32.mrf.mxu0
    %v628 = vadd.f32 0.0, %v627
    %v629 = vpop.f32.mrf.mxu0
    %v630 = vpop.f32.mrf.mxu0
    %v631 = vadd.f32 0.0, %v630
    %v632 = vpop.f32.mrf.mxu0
    %633 = vmatprep.mubr.bf16.mxu0 0
    %634 = vmatmul.mubr.bf16.gmra.mxu0 %v398
    %v635 = vpop.f32.mrf.mxu0
    %v636 = vadd.f32 0.0, %v635
    %v637 = vpop.f32.mrf.mxu0
    %v638 = vpop.f32.mrf.mxu0
    %v639 = vadd.f32 0.0, %v638
    %v640 = vpop.f32.mrf.mxu0
    %641 = vmatprep.mubr.bf16.mxu0 0
    %642 = vmatmul.mubr.bf16.gmra.mxu0 %v399
    %v643 = vpop.f32.mrf.mxu0
    %v644 = vadd.f32 0.0, %v643
    %v645 = vpop.f32.mrf.mxu0
    %v646 = vpop.f32.mrf.mxu0
    %v647 = vadd.f32 0.0, %v646
    %v648 = vpop.f32.mrf.mxu0
    %649 = vmatprep.mubr.bf16.mxu0 0
    %650 = vmatmul.mubr.bf16.gmra.mxu0 %v400
    %v651 = vpop.f32.mrf.mxu0
    %v652 = vadd.f32 0.0, %v651
    %v653 = vpop.f32.mrf.mxu0
    %v654 = vpop.f32.mrf.mxu0
    %v655 = vadd.f32 0.0, %v654
    %v656 = vpop.f32.mrf.mxu0
    %657 = vmatprep.mubr.bf16.mxu0 0
    %658 = vmatmul.mubr.bf16.gmra.mxu0 %v401
    %v659 = vpop.f32.mrf.mxu0
    %v660 = vadd.f32 0.0, %v659
    %v661 = vpop.f32.mrf.mxu0
    %v662 = vpop.f32.mrf.mxu0
    %v663 = vadd.f32 0.0, %v662
    %v664 = vpop.f32.mrf.mxu0
    %665 = vmatprep.mubr.bf16.mxu0 0
    %666 = vmatmul.mubr.bf16.gmra.mxu0 %v402
    %v667 = vpop.f32.mrf.mxu0
    %v668 = vadd.f32 0.0, %v667
    %v669 = vpop.f32.mrf.mxu0
    %v670 = vpop.f32.mrf.mxu0
    %v671 = vadd.f32 0.0, %v670
    %v672 = vpop.f32.mrf.mxu0
    %673 = vmatprep.mubr.bf16.mxu0 0
    %674 = vmatmul.mubr.bf16.gmra.mxu0 %v403
    %v675 = vpop.f32.mrf.mxu0
    %v676 = vadd.f32 0.0, %v675
    %v677 = vpop.f32.mrf.mxu0
    %v678 = vpop.f32.mrf.mxu0
    %v679 = vadd.f32 0.0, %v678
    %v680 = vpop.f32.mrf.mxu0
    %681 = vmatprep.mubr.bf16.mxu0 0
    %682 = vmatmul.mubr.bf16.gmra.mxu0 %v404
    %v683 = vpop.f32.mrf.mxu0
    %v684 = vadd.f32 0.0, %v683
    %v685 = vpop.f32.mrf.mxu0
    %v686 = vpop.f32.mrf.mxu0
    %v687 = vadd.f32 0.0, %v686
    %v688 = vpop.f32.mrf.mxu0
    %689 = vmatprep.mubr.bf16.mxu0 0
    %690 = vmatmul.mubr.bf16.gmra.mxu0 %v405
    %v691 = vpop.f32.mrf.mxu0
    %v692 = vadd.f32 0.0, %v691
    %v693 = vpop.f32.mrf.mxu0
    %v694 = vpop.f32.mrf.mxu0
    %v695 = vadd.f32 0.0, %v694
    %v696 = vpop.f32.mrf.mxu0
    %697 = vmatprep.mubr.bf16.mxu0 0
    %698 = vmatmul.mubr.bf16.gmra.mxu0 %v406
    %v699 = vpop.f32.mrf.mxu0
    %v700 = vadd.f32 0.0, %v699
    %v701 = vpop.f32.mrf.mxu0
    %v702 = vpop.f32.mrf.mxu0
    %v703 = vadd.f32 0.0, %v702
    %v704 = vpop.f32.mrf.mxu0
    %705 = vmatprep.mubr.bf16.mxu0 0
    %706 = vmatmul.mubr.bf16.gmra.mxu0 %v407
    %v707 = vpop.f32.mrf.mxu0
    %v708 = vadd.f32 0.0, %v707
    %v709 = vpop.f32.mrf.mxu0
    %v710 = vpop.f32.mrf.mxu0
    %v711 = vadd.f32 0.0, %v710
    %v712 = vpop.f32.mrf.mxu0
    %713 = vmatprep.mubr.bf16.mxu0 0
    %714 = vmatmul.mubr.bf16.gmra.mxu0 %v408
    %v715 = vpop.f32.mrf.mxu0
    %v716 = vadd.f32 0.0, %v715
    %v717 = vpop.f32.mrf.mxu0
    %v718 = vpop.f32.mrf.mxu0
    %v719 = vadd.f32 0.0, %v718
    %v720 = vpop.f32.mrf.mxu0
    %721 = vmatprep.mubr.bf16.mxu0 0
    %722 = vmatmul.mubr.bf16.gmra.mxu0 %v409
    %v723 = vpop.f32.mrf.mxu0
    %v724 = vadd.f32 0.0, %v723
    %v725 = vpop.f32.mrf.mxu0
    %v726 = vpop.f32.mrf.mxu0
    %v727 = vadd.f32 0.0, %v726
    %v728 = vpop.f32.mrf.mxu0
    %729 = vmatprep.mubr.bf16.mxu0 0
    %730 = vmatmul.mubr.bf16.gmra.mxu0 %v410
    %v731 = vpop.f32.mrf.mxu0
    %v732 = vadd.f32 0.0, %v731
    %v733 = vpop.f32.mrf.mxu0
    %v734 = vpop.f32.mrf.mxu0
    %v735 = vadd.f32 0.0, %v734
    %v736 = vpop.f32.mrf.mxu0
    %737 = vmatprep.mubr.bf16.mxu0 0
    %738 = vmatmul.mubr.bf16.gmra.mxu0 %v411
    %v739 = vpop.f32.mrf.mxu0
    %v740 = vadd.f32 0.0, %v739
    %v741 = vpop.f32.mrf.mxu0
    %v742 = vpop.f32.mrf.mxu0
    %v743 = vadd.f32 0.0, %v742
    %v744 = vpop.f32.mrf.mxu0
    %745 = vmatprep.mubr.bf16.mxu0 0
    %746 = vmatmul.mubr.bf16.gmra.mxu0 %v412
    %v747 = vpop.f32.mrf.mxu0
    %v748 = vadd.f32 0.0, %v747
    %v749 = vpop.f32.mrf.mxu0
    %v750 = vpop.f32.mrf.mxu0
    %v751 = vadd.f32 0.0, %v750
    %v752 = vpop.f32.mrf.mxu0
    %753 = vmatprep.mubr.bf16.mxu0 0
    %754 = vmatmul.mubr.bf16.gmra.mxu0 %v413
    %v755 = vpop.f32.mrf.mxu0
    %v756 = vadd.f32 0.0, %v755
    %v757 = vpop.f32.mrf.mxu0
    %v758 = vpop.f32.mrf.mxu0
    %v759 = vadd.f32 0.0, %v758
    %v760 = vpop.f32.mrf.mxu0
    %761 = vmatprep.mubr.bf16.mxu0 0
    %762 = vmatmul.mubr.bf16.gmra.mxu0 %v414
    %v763 = vpop.f32.mrf.mxu0
    %v764 = vadd.f32 0.0, %v763
    %v765 = vpop.f32.mrf.mxu0
    %v766 = vpop.f32.mrf.mxu0
    %v767 = vadd.f32 0.0, %v766
    %v768 = vpop.f32.mrf.mxu0
    %769 = vmatprep.mubr.bf16.mxu0 0
    %770 = vmatmul.mubr.bf16.gmra.mxu0 %v415
    %v771 = vpop.f32.mrf.mxu0
    %v772 = vadd.f32 0.0, %v771
    %v773 = vpop.f32.mrf.mxu0
    %v774 = vpop.f32.mrf.mxu0
    %v775 = vadd.f32 0.0, %v774
    %v776 = vpop.f32.mrf.mxu0
    %777 = vmatprep.mubr.bf16.mxu0 0
    %778 = vmatmul.mubr.bf16.gmra.mxu0 %v416
    %v779 = vpop.f32.mrf.mxu0
    %v780 = vadd.f32 0.0, %v779
    %v781 = vpop.f32.mrf.mxu0
    %v782 = vpop.f32.mrf.mxu0
    %v783 = vadd.f32 0.0, %v782
    %v784 = vpop.f32.mrf.mxu0
    %785 = vdwg.mxu0
    %v786 = vadd.f32 %v113, %v532
    %v787 = vadd.f32 %v114, %v535
    %v788 = vadd.f32 %v115, %v540
    %v789 = vadd.f32 %v116, %v543
    %v790 = vadd.f32 %v117, %v548
    %v791 = vadd.f32 %v118, %v551
    %v792 = vadd.f32 %v119, %v556
    %v793 = vadd.f32 %v120, %v559
    %v794 = vadd.f32 %v121, %v564
    %v795 = vadd.f32 %v122, %v567
    %v796 = vadd.f32 %v123, %v572
    %v797 = vadd.f32 %v124, %v575
    %v798 = vadd.f32 %v125, %v580
    %v799 = vadd.f32 %v126, %v583
    %v800 = vadd.f32 %v127, %v588
    %v801 = vadd.f32 %v128, %v591
    %v802 = vadd.f32 %v129, %v596
    %v803 = vadd.f32 %v130, %v599
    %v804 = vadd.f32 %v131, %v604
    %v805 = vadd.f32 %v132, %v607
    %v806 = vadd.f32 %v133, %v612
    %v807 = vadd.f32 %v134, %v615
    %v808 = vadd.f32 %v135, %v620
    %v809 = vadd.f32 %v136, %v623
    %v810 = vadd.f32 %v137, %v628
    %v811 = vadd.f32 %v138, %v631
    %v812 = vadd.f32 %v139, %v636
    %v813 = vadd.f32 %v140, %v639
    %v814 = vadd.f32 %v141, %v644
    %v815 = vadd.f32 %v142, %v647
    %v816 = vadd.f32 %v143, %v652
    %v817 = vadd.f32 %v144, %v655
    %v818 = vadd.f32 %v145, %v660
    %v819 = vadd.f32 %v146, %v663
    %v820 = vadd.f32 %v147, %v668
    %v821 = vadd.f32 %v148, %v671
    %v822 = vadd.f32 %v149, %v676
    %v823 = vadd.f32 %v150, %v679
    %v824 = vadd.f32 %v151, %v684
    %v825 = vadd.f32 %v152, %v687
    %v826 = vadd.f32 %v153, %v692
    %v827 = vadd.f32 %v154, %v695
    %v828 = vadd.f32 %v155, %v700
    %v829 = vadd.f32 %v156, %v703
    %v830 = vadd.f32 %v157, %v708
    %v831 = vadd.f32 %v158, %v711
    %v832 = vadd.f32 %v159, %v716
    %v833 = vadd.f32 %v160, %v719
    %v834 = vadd.f32 %v161, %v724
    %v835 = vadd.f32 %v162, %v727
    %v836 = vadd.f32 %v163, %v732
    %v837 = vadd.f32 %v164, %v735
    %v838 = vadd.f32 %v165, %v740
    %v839 = vadd.f32 %v166, %v743
    %v840 = vadd.f32 %v167, %v748
    %v841 = vadd.f32 %v168, %v751
    %v842 = vadd.f32 %v169, %v756
    %v843 = vadd.f32 %v170, %v759
    %v844 = vadd.f32 %v171, %v764
    %v845 = vadd.f32 %v172, %v767
    %v846 = vadd.f32 %v173, %v772
    %v847 = vadd.f32 %v174, %v775
    %v848 = vadd.f32 %v175, %v780
    %v849 = vadd.f32 %v176, %v783
    %850 = vst [vmem:[#allocation2] sm:$0xff] %v786
    %851 = vst [vmem:[#allocation2 + $0x8] sm:$0xff] %v787
    %852 = vst [vmem:[#allocation2 + $0x10] sm:$0xff] %v788
    %853 = vst [vmem:[#allocation2 + $0x18] sm:$0xff] %v789
    %854 = vst [vmem:[#allocation2 + $0x20] sm:$0xff] %v790
    %855 = vst [vmem:[#allocation2 + $0x28] sm:$0xff] %v791
    %856 = vst [vmem:[#allocation2 + $0x30] sm:$0xff] %v792
    %857 = vst [vmem:[#allocation2 + $0x38] sm:$0xff] %v793
    %858 = vst [vmem:[#allocation2 + $0x40] sm:$0xff] %v794
    %859 = vst [vmem:[#allocation2 + $0x48] sm:$0xff] %v795
    %860 = vst [vmem:[#allocation2 + $0x50] sm:$0xff] %v796
    %861 = vst [vmem:[#allocation2 + $0x58] sm:$0xff] %v797
    %862 = vst [vmem:[#allocation2 + $0x60] sm:$0xff] %v798
    %863 = vst [vmem:[#allocation2 + $0x68] sm:$0xff] %v799
    %864 = vst [vmem:[#allocation2 + $0x70] sm:$0xff] %v800
    %865 = vst [vmem:[#allocation2 + $0x78] sm:$0xff] %v801
    %866 = vst [vmem:[#allocation2 + $0x80] sm:$0xff] %v802
    %867 = vst [vmem:[#allocation2 + $0x88] sm:$0xff] %v803
    %868 = vst [vmem:[#allocation2 + $0x90] sm:$0xff] %v804
    %869 = vst [vmem:[#allocation2 + $0x98] sm:$0xff] %v805
    %870 = vst [vmem:[#allocation2 + $0xa0] sm:$0xff] %v806
    %871 = vst [vmem:[#allocation2 + $0xa8] sm:$0xff] %v807
    %872 = vst [vmem:[#allocation2 + $0xb0] sm:$0xff] %v808
    %873 = vst [vmem:[#allocation2 + $0xb8] sm:$0xff] %v809
    %874 = vst [vmem:[#allocation2 + $0xc0] sm:$0xff] %v810
    %875 = vst [vmem:[#allocation2 + $0xc8] sm:$0xff] %v811
    %876 = vst [vmem:[#allocation2 + $0xd0] sm:$0xff] %v812
    %877 = vst [vmem:[#allocation2 + $0xd8] sm:$0xff] %v813
    %878 = vst [vmem:[#allocation2 + $0xe0] sm:$0xff] %v814
    %879 = vst [vmem:[#allocation2 + $0xe8] sm:$0xff] %v815
    %880 = vst [vmem:[#allocation2 + $0xf0] sm:$0xff] %v816
    %881 = vst [vmem:[#allocation2 + $0xf8] sm:$0xff] %v817
    %882 = vst [vmem:[#allocation2 + $0x100] sm:$0xff] %v818
    %883 = vst [vmem:[#allocation2 + $0x108] sm:$0xff] %v819
    %884 = vst [vmem:[#allocation2 + $0x110] sm:$0xff] %v820
    %885 = vst [vmem:[#allocation2 + $0x118] sm:$0xff] %v821
    %886 = vst [vmem:[#allocation2 + $0x120] sm:$0xff] %v822
    %887 = vst [vmem:[#allocation2 + $0x128] sm:$0xff] %v823
    %888 = vst [vmem:[#allocation2 + $0x130] sm:$0xff] %v824
    %889 = vst [vmem:[#allocation2 + $0x138] sm:$0xff] %v825
    %890 = vst [vmem:[#allocation2 + $0x140] sm:$0xff] %v826
    %891 = vst [vmem:[#allocation2 + $0x148] sm:$0xff] %v827
    %892 = vst [vmem:[#allocation2 + $0x150] sm:$0xff] %v828
    %893 = vst [vmem:[#allocation2 + $0x158] sm:$0xff] %v829
    %894 = vst [vmem:[#allocation2 + $0x160] sm:$0xff] %v830
    %895 = vst [vmem:[#allocation2 + $0x168] sm:$0xff] %v831
    %896 = vst [vmem:[#allocation2 + $0x170] sm:$0xff] %v832
    %897 = vst [vmem:[#allocation2 + $0x178] sm:$0xff] %v833
    %898 = vst [vmem:[#allocation2 + $0x180] sm:$0xff] %v834
    %899 = vst [vmem:[#allocation2 + $0x188] sm:$0xff] %v835
    %900 = vst [vmem:[#allocation2 + $0x190] sm:$0xff] %v836
    %901 = vst [vmem:[#allocation2 + $0x198] sm:$0xff] %v837
    %902 = vst [vmem:[#allocation2 + $0x1a0] sm:$0xff] %v838
    %903 = vst [vmem:[#allocation2 + $0x1a8] sm:$0xff] %v839
    %904 = vst [vmem:[#allocation2 + $0x1b0] sm:$0xff] %v840
    %905 = vst [vmem:[#allocation2 + $0x1b8] sm:$0xff] %v841
    %906 = vst [vmem:[#allocation2 + $0x1c0] sm:$0xff] %v842
    %907 = vst [vmem:[#allocation2 + $0x1c8] sm:$0xff] %v843
    %908 = vst [vmem:[#allocation2 + $0x1d0] sm:$0xff] %v844
    %909 = vst [vmem:[#allocation2 + $0x1d8] sm:$0xff] %v845
    %910 = vst [vmem:[#allocation2 + $0x1e0] sm:$0xff] %v846
    %911 = vst [vmem:[#allocation2 + $0x1e8] sm:$0xff] %v847
    %912 = vst [vmem:[#allocation2 + $0x1f0] sm:$0xff] %v848
    %913 = vst [vmem:[#allocation2 + $0x1f8] sm:$0xff] %v849
    // Predicated region
    $region22: #{tpu_custom_call.1} parent=1 // pred_check
      %p914 = pneg %p45
    $region23: #{tpu_custom_call.1} parent=1 // pred_check_branch
      %916 = sbr.rel (%p914) target = $region25
    $region24: #{tpu_custom_call.1} parent=1 // pred_region
      %v917 = vld [vmem:[#allocation2] sm:$0xff]
      %v918 = vld [vmem:[#allocation2 + $0x8] sm:$0xff]
      %v919 = vld [vmem:[#allocation2 + $0x10] sm:$0xff]
      %v920 = vld [vmem:[#allocation2 + $0x18] sm:$0xff]
      %v921 = vld [vmem:[#allocation2 + $0x20] sm:$0xff]
      %v922 = vld [vmem:[#allocation2 + $0x28] sm:$0xff]
      %v923 = vld [vmem:[#allocation2 + $0x30] sm:$0xff]
      %v924 = vld [vmem:[#allocation2 + $0x38] sm:$0xff]
      %v925 = vld [vmem:[#allocation2 + $0x40] sm:$0xff]
      %v926 = vld [vmem:[#allocation2 + $0x48] sm:$0xff]
      %v927 = vld [vmem:[#allocation2 + $0x50] sm:$0xff]
      %v928 = vld [vmem:[#allocation2 + $0x58] sm:$0xff]
      %v929 = vld [vmem:[#allocation2 + $0x60] sm:$0xff]
      %v930 = vld [vmem:[#allocation2 + $0x68] sm:$0xff]
      %v931 = vld [vmem:[#allocation2 + $0x70] sm:$0xff]
      %v932 = vld [vmem:[#allocation2 + $0x78] sm:$0xff]
      %v933 = vld [vmem:[#allocation2 + $0x80] sm:$0xff]
      %v934 = vld [vmem:[#allocation2 + $0x88] sm:$0xff]
      %v935 = vld [vmem:[#allocation2 + $0x90] sm:$0xff]
      %v936 = vld [vmem:[#allocation2 + $0x98] sm:$0xff]
      %v937 = vld [vmem:[#allocation2 + $0xa0] sm:$0xff]
      %v938 = vld [vmem:[#allocation2 + $0xa8] sm:$0xff]
      %v939 = vld [vmem:[#allocation2 + $0xb0] sm:$0xff]
      %v940 = vld [vmem:[#allocation2 + $0xb8] sm:$0xff]
      %v941 = vld [vmem:[#allocation2 + $0xc0] sm:$0xff]
      %v942 = vld [vmem:[#allocation2 + $0xc8] sm:$0xff]
      %v943 = vld [vmem:[#allocation2 + $0xd0] sm:$0xff]
      %v944 = vld [vmem:[#allocation2 + $0xd8] sm:$0xff]
      %v945 = vld [vmem:[#allocation2 + $0xe0] sm:$0xff]
      %v946 = vld [vmem:[#allocation2 + $0xe8] sm:$0xff]
      %v947 = vld [vmem:[#allocation2 + $0xf0] sm:$0xff]
      %v948 = vld [vmem:[#allocation2 + $0xf8] sm:$0xff]
      %v949 = vld [vmem:[#allocation2 + $0x100] sm:$0xff]
      %v950 = vld [vmem:[#allocation2 + $0x108] sm:$0xff]
      %v951 = vld [vmem:[#allocation2 + $0x110] sm:$0xff]
      %v952 = vld [vmem:[#allocation2 + $0x118] sm:$0xff]
      %v953 = vld [vmem:[#allocation2 + $0x120] sm:$0xff]
      %v954 = vld [vmem:[#allocation2 + $0x128] sm:$0xff]
      %v955 = vld [vmem:[#allocation2 + $0x130] sm:$0xff]
      %v956 = vld [vmem:[#allocation2 + $0x138] sm:$0xff]
      %v957 = vld [vmem:[#allocation2 + $0x140] sm:$0xff]
      %v958 = vld [vmem:[#allocation2 + $0x148] sm:$0xff]
      %v959 = vld [vmem:[#allocation2 + $0x150] sm:$0xff]
      %v960 = vld [vmem:[#allocation2 + $0x158] sm:$0xff]
      %v961 = vld [vmem:[#allocation2 + $0x160] sm:$0xff]
      %v962 = vld [vmem:[#allocation2 + $0x168] sm:$0xff]
      %v963 = vld [vmem:[#allocation2 + $0x170] sm:$0xff]
      %v964 = vld [vmem:[#allocation2 + $0x178] sm:$0xff]
      %v965 = vld [vmem:[#allocation2 + $0x180] sm:$0xff]
      %v966 = vld [vmem:[#allocation2 + $0x188] sm:$0xff]
      %v967 = vld [vmem:[#allocation2 + $0x190] sm:$0xff]
      %v968 = vld [vmem:[#allocation2 + $0x198] sm:$0xff]
      %v969 = vld [vmem:[#allocation2 + $0x1a0] sm:$0xff]
      %v970 = vld [vmem:[#allocation2 + $0x1a8] sm:$0xff]
      %v971 = vld [vmem:[#allocation2 + $0x1b0] sm:$0xff]
      %v972 = vld [vmem:[#allocation2 + $0x1b8] sm:$0xff]
      %v973 = vld [vmem:[#allocation2 + $0x1c0] sm:$0xff]
      %v974 = vld [vmem:[#allocation2 + $0x1c8] sm:$0xff]
      %v975 = vld [vmem:[#allocation2 + $0x1d0] sm:$0xff]
      %v976 = vld [vmem:[#allocation2 + $0x1d8] sm:$0xff]
      %v977 = vld [vmem:[#allocation2 + $0x1e0] sm:$0xff]
      %v978 = vld [vmem:[#allocation2 + $0x1e8] sm:$0xff]
      %v979 = vld [vmem:[#allocation2 + $0x1f0] sm:$0xff]
      %v980 = vld [vmem:[#allocation2 + $0x1f8] sm:$0xff]
      %v981 = vpack.c.bf16 %v918, %v917
      %v982 = vpack.c.bf16 %v920, %v919
      %v983 = vpack.c.bf16 %v922, %v921
      %v984 = vpack.c.bf16 %v924, %v923
      %v985 = vpack.c.bf16 %v926, %v925
      %v986 = vpack.c.bf16 %v928, %v927
      %v987 = vpack.c.bf16 %v930, %v929
      %v988 = vpack.c.bf16 %v932, %v931
      %v989 = vpack.c.bf16 %v934, %v933
      %v990 = vpack.c.bf16 %v936, %v935
      %v991 = vpack.c.bf16 %v938, %v937
      %v992 = vpack.c.bf16 %v940, %v939
      %v993 = vpack.c.bf16 %v942, %v941
      %v994 = vpack.c.bf16 %v944, %v943
      %v995 = vpack.c.bf16 %v946, %v945
      %v996 = vpack.c.bf16 %v948, %v947
      %v997 = vpack.c.bf16 %v950, %v949
      %v998 = vpack.c.bf16 %v952, %v951
      %v999 = vpack.c.bf16 %v954, %v953
      %v1000 = vpack.c.bf16 %v956, %v955
      %v1001 = vpack.c.bf16 %v958, %v957
      %v1002 = vpack.c.bf16 %v960, %v959
      %v1003 = vpack.c.bf16 %v962, %v961
      %v1004 = vpack.c.bf16 %v964, %v963
      %v1005 = vpack.c.bf16 %v966, %v965
      %v1006 = vpack.c.bf16 %v968, %v967
      %v1007 = vpack.c.bf16 %v970, %v969
      %v1008 = vpack.c.bf16 %v972, %v971
      %v1009 = vpack.c.bf16 %v974, %v973
      %v1010 = vpack.c.bf16 %v976, %v975
      %v1011 = vpack.c.bf16 %v978, %v977
      %v1012 = vpack.c.bf16 %v980, %v979
      %v1045 = vunpack.c.l.b16 %v981
      %v1046 = vunpack.c.h.b16 %v981
      %v1047 = vunpack.c.l.b16 %v982
      %v1048 = vunpack.c.h.b16 %v982
      %v1049 = vunpack.c.l.b16 %v983
      %v1050 = vunpack.c.h.b16 %v983
      %v1051 = vunpack.c.l.b16 %v984
      %v1052 = vunpack.c.h.b16 %v984
      %v1053 = vunpack.c.l.b16 %v985
      %v1054 = vunpack.c.h.b16 %v985
      %v1055 = vunpack.c.l.b16 %v986
      %v1056 = vunpack.c.h.b16 %v986
      %v1057 = vunpack.c.l.b16 %v987
      %v1058 = vunpack.c.h.b16 %v987
      %v1059 = vunpack.c.l.b16 %v988
      %v1060 = vunpack.c.h.b16 %v988
      %v1061 = vunpack.c.l.b16 %v989
      %v1062 = vunpack.c.h.b16 %v989
      %v1063 = vunpack.c.l.b16 %v990
      %v1064 = vunpack.c.h.b16 %v990
      %v1065 = vunpack.c.l.b16 %v991
      %v1066 = vunpack.c.h.b16 %v991
      %v1067 = vunpack.c.l.b16 %v992
      %v1068 = vunpack.c.h.b16 %v992
      %v1069 = vunpack.c.l.b16 %v993
      %v1070 = vunpack.c.h.b16 %v993
      %v1071 = vunpack.c.l.b16 %v994
      %v1072 = vunpack.c.h.b16 %v994
      %v1073 = vunpack.c.l.b16 %v995
      %v1074 = vunpack.c.h.b16 %v995
      %v1075 = vunpack.c.l.b16 %v996
      %v1076 = vunpack.c.h.b16 %v996
      %v1077 = vunpack.c.l.b16 %v997
      %v1078 = vunpack.c.h.b16 %v997
      %v1079 = vunpack.c.l.b16 %v998
      %v1080 = vunpack.c.h.b16 %v998
      %v1081 = vunpack.c.l.b16 %v999
      %v1082 = vunpack.c.h.b16 %v999
      %v1083 = vunpack.c.l.b16 %v1000
      %v1084 = vunpack.c.h.b16 %v1000
      %v1085 = vunpack.c.l.b16 %v1001
      %v1086 = vunpack.c.h.b16 %v1001
      %v1087 = vunpack.c.l.b16 %v1002
      %v1088 = vunpack.c.h.b16 %v1002
      %v1089 = vunpack.c.l.b16 %v1003
      %v1090 = vunpack.c.h.b16 %v1003
      %v1091 = vunpack.c.l.b16 %v1004
      %v1092 = vunpack.c.h.b16 %v1004
      %v1093 = vunpack.c.l.b16 %v1005
      %v1094 = vunpack.c.h.b16 %v1005
      %v1095 = vunpack.c.l.b16 %v1006
      %v1096 = vunpack.c.h.b16 %v1006
      %v1097 = vunpack.c.l.b16 %v1007
      %v1098 = vunpack.c.h.b16 %v1007
      %v1099 = vunpack.c.l.b16 %v1008
      %v1100 = vunpack.c.h.b16 %v1008
      %v1101 = vunpack.c.l.b16 %v1009
      %v1102 = vunpack.c.h.b16 %v1009
      %v1103 = vunpack.c.l.b16 %v1010
      %v1104 = vunpack.c.h.b16 %v1010
      %v1105 = vunpack.c.l.b16 %v1011
      %v1106 = vunpack.c.h.b16 %v1011
      %v1107 = vunpack.c.l.b16 %v1012
      %v1108 = vunpack.c.h.b16 %v1012
      %v1109 = vpack.c.b16 %v1045, %v1045
      %v1110 = vpack.c.b16 %v1046, %v1046
      %v1111 = vpack.c.b16 %v1047, %v1047
      %v1112 = vpack.c.b16 %v1048, %v1048
      %v1113 = vpack.c.b16 %v1049, %v1049
      %v1114 = vpack.c.b16 %v1050, %v1050
      %v1115 = vpack.c.b16 %v1051, %v1051
      %v1116 = vpack.c.b16 %v1052, %v1052
      %v1117 = vpack.c.b16 %v1053, %v1053
      %v1118 = vpack.c.b16 %v1054, %v1054
      %v1119 = vpack.c.b16 %v1055, %v1055
      %v1120 = vpack.c.b16 %v1056, %v1056
      %v1121 = vpack.c.b16 %v1057, %v1057
      %v1122 = vpack.c.b16 %v1058, %v1058
      %v1123 = vpack.c.b16 %v1059, %v1059
      %v1124 = vpack.c.b16 %v1060, %v1060
      %v1125 = vpack.c.b16 %v1061, %v1061
      %v1126 = vpack.c.b16 %v1062, %v1062
      %v1127 = vpack.c.b16 %v1063, %v1063
      %v1128 = vpack.c.b16 %v1064, %v1064
      %v1129 = vpack.c.b16 %v1065, %v1065
      %v1130 = vpack.c.b16 %v1066, %v1066
      %v1131 = vpack.c.b16 %v1067, %v1067
      %v1132 = vpack.c.b16 %v1068, %v1068
      %v1133 = vpack.c.b16 %v1069, %v1069
      %v1134 = vpack.c.b16 %v1070, %v1070
      %v1135 = vpack.c.b16 %v1071, %v1071
      %v1136 = vpack.c.b16 %v1072, %v1072
      %v1137 = vpack.c.b16 %v1073, %v1073
      %v1138 = vpack.c.b16 %v1074, %v1074
      %v1139 = vpack.c.b16 %v1075, %v1075
      %v1140 = vpack.c.b16 %v1076, %v1076
      %v1141 = vpack.c.b16 %v1077, %v1077
      %v1142 = vpack.c.b16 %v1078, %v1078
      %v1143 = vpack.c.b16 %v1079, %v1079
      %v1144 = vpack.c.b16 %v1080, %v1080
      %v1145 = vpack.c.b16 %v1081, %v1081
      %v1146 = vpack.c.b16 %v1082, %v1082
      %v1147 = vpack.c.b16 %v1083, %v1083
      %v1148 = vpack.c.b16 %v1084, %v1084
      %v1149 = vpack.c.b16 %v1085, %v1085
      %v1150 = vpack.c.b16 %v1086, %v1086
      %v1151 = vpack.c.b16 %v1087, %v1087
      %v1152 = vpack.c.b16 %v1088, %v1088
      %v1153 = vpack.c.b16 %v1089, %v1089
      %v1154 = vpack.c.b16 %v1090, %v1090
      %v1155 = vpack.c.b16 %v1091, %v1091
      %v1156 = vpack.c.b16 %v1092, %v1092
      %v1157 = vpack.c.b16 %v1093, %v1093
      %v1158 = vpack.c.b16 %v1094, %v1094
      %v1159 = vpack.c.b16 %v1095, %v1095
      %v1160 = vpack.c.b16 %v1096, %v1096
      %v1161 = vpack.c.b16 %v1097, %v1097
      %v1162 = vpack.c.b16 %v1098, %v1098
      %v1163 = vpack.c.b16 %v1099, %v1099
      %v1164 = vpack.c.b16 %v1100, %v1100
      %v1165 = vpack.c.b16 %v1101, %v1101
      %v1166 = vpack.c.b16 %v1102, %v1102
      %v1167 = vpack.c.b16 %v1103, %v1103
      %v1168 = vpack.c.b16 %v1104, %v1104
      %v1169 = vpack.c.b16 %v1105, %v1105
      %v1170 = vpack.c.b16 %v1106, %v1106
      %v1171 = vpack.c.b16 %v1107, %v1107
      %v1172 = vpack.c.b16 %v1108, %v1108
      %1237 = vst [vmem:[#allocation8] sm:$0xf] %v1109
      %1238 = vst [vmem:[#allocation8 + $0x4] sm:$0xf] %v1110
      %1239 = vst [vmem:[#allocation8 + $0x8] sm:$0xf] %v1111
      %1240 = vst [vmem:[#allocation8 + $0xc] sm:$0xf] %v1112
      %1241 = vst [vmem:[#allocation8 + $0x10] sm:$0xf] %v1113
      %1242 = vst [vmem:[#allocation8 + $0x14] sm:$0xf] %v1114
      %1243 = vst [vmem:[#allocation8 + $0x18] sm:$0xf] %v1115
      %1244 = vst [vmem:[#allocation8 + $0x1c] sm:$0xf] %v1116
      %1245 = vst [vmem:[#allocation8 + $0x20] sm:$0xf] %v1117
      %1246 = vst [vmem:[#allocation8 + $0x24] sm:$0xf] %v1118
      %1247 = vst [vmem:[#allocation8 + $0x28] sm:$0xf] %v1119
      %1248 = vst [vmem:[#allocation8 + $0x2c] sm:$0xf] %v1120
      %1249 = vst [vmem:[#allocation8 + $0x30] sm:$0xf] %v1121
      %1250 = vst [vmem:[#allocation8 + $0x34] sm:$0xf] %v1122
      %1251 = vst [vmem:[#allocation8 + $0x38] sm:$0xf] %v1123
      %1252 = vst [vmem:[#allocation8 + $0x3c] sm:$0xf] %v1124
      %1253 = vst [vmem:[#allocation8 + $0x40] sm:$0xf] %v1125
      %1254 = vst [vmem:[#allocation8 + $0x44] sm:$0xf] %v1126
      %1255 = vst [vmem:[#allocation8 + $0x48] sm:$0xf] %v1127
      %1256 = vst [vmem:[#allocation8 + $0x4c] sm:$0xf] %v1128
      %1257 = vst [vmem:[#allocation8 + $0x50] sm:$0xf] %v1129
      %1258 = vst [vmem:[#allocation8 + $0x54] sm:$0xf] %v1130
      %1259 = vst [vmem:[#allocation8 + $0x58] sm:$0xf] %v1131
      %1260 = vst [vmem:[#allocation8 + $0x5c] sm:$0xf] %v1132
      %1261 = vst [vmem:[#allocation8 + $0x60] sm:$0xf] %v1133
      %1262 = vst [vmem:[#allocation8 + $0x64] sm:$0xf] %v1134
      %1263 = vst [vmem:[#allocation8 + $0x68] sm:$0xf] %v1135
      %1264 = vst [vmem:[#allocation8 + $0x6c] sm:$0xf] %v1136
      %1265 = vst [vmem:[#allocation8 + $0x70] sm:$0xf] %v1137
      %1266 = vst [vmem:[#allocation8 + $0x74] sm:$0xf] %v1138
      %1267 = vst [vmem:[#allocation8 + $0x78] sm:$0xf] %v1139
      %1268 = vst [vmem:[#allocation8 + $0x7c] sm:$0xf] %v1140
      %1269 = vst [vmem:[#allocation8 + $0x80] sm:$0xf] %v1141
      %1270 = vst [vmem:[#allocation8 + $0x84] sm:$0xf] %v1142
      %1271 = vst [vmem:[#allocation8 + $0x88] sm:$0xf] %v1143
      %1272 = vst [vmem:[#allocation8 + $0x8c] sm:$0xf] %v1144
      %1273 = vst [vmem:[#allocation8 + $0x90] sm:$0xf] %v1145
      %1274 = vst [vmem:[#allocation8 + $0x94] sm:$0xf] %v1146
      %1275 = vst [vmem:[#allocation8 + $0x98] sm:$0xf] %v1147
      %1276 = vst [vmem:[#allocation8 + $0x9c] sm:$0xf] %v1148
      %1277 = vst [vmem:[#allocation8 + $0xa0] sm:$0xf] %v1149
      %1278 = vst [vmem:[#allocation8 + $0xa4] sm:$0xf] %v1150
      %1279 = vst [vmem:[#allocation8 + $0xa8] sm:$0xf] %v1151
      %1280 = vst [vmem:[#allocation8 + $0xac] sm:$0xf] %v1152
      %1281 = vst [vmem:[#allocation8 + $0xb0] sm:$0xf] %v1153
      %1282 = vst [vmem:[#allocation8 + $0xb4] sm:$0xf] %v1154
      %1283 = vst [vmem:[#allocation8 + $0xb8] sm:$0xf] %v1155
      %1284 = vst [vmem:[#allocation8 + $0xbc] sm:$0xf] %v1156
      %1285 = vst [vmem:[#allocation8 + $0xc0] sm:$0xf] %v1157
      %1286 = vst [vmem:[#allocation8 + $0xc4] sm:$0xf] %v1158
      %1287 = vst [vmem:[#allocation8 + $0xc8] sm:$0xf] %v1159
      %1288 = vst [vmem:[#allocation8 + $0xcc] sm:$0xf] %v1160
      %1289 = vst [vmem:[#allocation8 + $0xd0] sm:$0xf] %v1161
      %1290 = vst [vmem:[#allocation8 + $0xd4] sm:$0xf] %v1162
      %1291 = vst [vmem:[#allocation8 + $0xd8] sm:$0xf] %v1163
      %1292 = vst [vmem:[#allocation8 + $0xdc] sm:$0xf] %v1164
      %1293 = vst [vmem:[#allocation8 + $0xe0] sm:$0xf] %v1165
      %1294 = vst [vmem:[#allocation8 + $0xe4] sm:$0xf] %v1166
      %1295 = vst [vmem:[#allocation8 + $0xe8] sm:$0xf] %v1167
      %1296 = vst [vmem:[#allocation8 + $0xec] sm:$0xf] %v1168
      %1297 = vst [vmem:[#allocation8 + $0xf0] sm:$0xf] %v1169
      %1298 = vst [vmem:[#allocation8 + $0xf4] sm:$0xf] %v1170
      %1299 = vst [vmem:[#allocation8 + $0xf8] sm:$0xf] %v1171
      %1300 = vst [vmem:[#allocation8 + $0xfc] sm:$0xf] %v1172
      %v1301 = vadd.f32 %v917, %v918
      %v1302 = vadd.f32 %v1301, %v919
      %v1303 = vadd.f32 %v1302, %v920
      %v1304 = vadd.f32 %v1303, %v921
      %v1305 = vadd.f32 %v1304, %v922
      %v1306 = vadd.f32 %v1305, %v923
      %v1307 = vadd.f32 %v1306, %v924
      %v1308 = vadd.f32 %v1307, %v925
      %v1309 = vadd.f32 %v1308, %v926
      %v1310 = vadd.f32 %v1309, %v927
      %v1311 = vadd.f32 %v1310, %v928
      %v1312 = vadd.f32 %v1311, %v929
      %v1313 = vadd.f32 %v1312, %v930
      %v1314 = vadd.f32 %v1313, %v931
      %v1315 = vadd.f32 %v1314, %v932
      %v1316 = vadd.f32 %v1315, %v933
      %v1317 = vadd.f32 %v1316, %v934
      %v1318 = vadd.f32 %v1317, %v935
      %v1319 = vadd.f32 %v1318, %v936
      %v1320 = vadd.f32 %v1319, %v937
      %v1321 = vadd.f32 %v1320, %v938
      %v1322 = vadd.f32 %v1321, %v939
      %v1323 = vadd.f32 %v1322, %v940
      %v1324 = vadd.f32 %v1323, %v941
      %v1325 = vadd.f32 %v1324, %v942
      %v1326 = vadd.f32 %v1325, %v943
      %v1327 = vadd.f32 %v1326, %v944
      %v1328 = vadd.f32 %v1327, %v945
      %v1329 = vadd.f32 %v1328, %v946
      %v1330 = vadd.f32 %v1329, %v947
      %v1331 = vadd.f32 %v1330, %v948
      %v1332 = vadd.f32 %v1331, %v949
      %v1333 = vadd.f32 %v1332, %v950
      %v1334 = vadd.f32 %v1333, %v951
      %v1335 = vadd.f32 %v1334, %v952
      %v1336 = vadd.f32 %v1335, %v953
      %v1337 = vadd.f32 %v1336, %v954
      %v1338 = vadd.f32 %v1337, %v955
      %v1339 = vadd.f32 %v1338, %v956
      %v1340 = vadd.f32 %v1339, %v957
      %v1341 = vadd.f32 %v1340, %v958
      %v1342 = vadd.f32 %v1341, %v959
      %v1343 = vadd.f32 %v1342, %v960
      %v1344 = vadd.f32 %v1343, %v961
      %v1345 = vadd.f32 %v1344, %v962
      %v1346 = vadd.f32 %v1345, %v963
      %v1347 = vadd.f32 %v1346, %v964
      %v1348 = vadd.f32 %v1347, %v965
      %v1349 = vadd.f32 %v1348, %v966
      %v1350 = vadd.f32 %v1349, %v967
      %v1351 = vadd.f32 %v1350, %v968
      %v1352 = vadd.f32 %v1351, %v969
      %v1353 = vadd.f32 %v1352, %v970
      %v1354 = vadd.f32 %v1353, %v971
      %v1355 = vadd.f32 %v1354, %v972
      %v1356 = vadd.f32 %v1355, %v973
      %v1357 = vadd.f32 %v1356, %v974
      %v1358 = vadd.f32 %v1357, %v975
      %v1359 = vadd.f32 %v1358, %v976
      %v1360 = vadd.f32 %v1359, %v977
      %v1361 = vadd.f32 %v1360, %v978
      %v1362 = vadd.f32 %v1361, %v979
      %v1363 = vadd.f32 %v1362, %v980
      %v1364 = vrot.slane %v1363, 4
      %v1365 = vadd.f32 %v1363, %v1364
      %v1366 = vrot.slane %v1365, 2
      %v1367 = vadd.f32 %v1365, %v1366
      %v1368 = vrot.slane %v1367, 1
      %v1369 = vadd.f32 %v1367, %v1368
      %1370 = vst [vmem:[#allocation9] sm:$0x1] %v1369
      %v1371 = vmul.f32 %v917, %v917
      %v1372 = vmul.f32 %v918, %v918
      %v1373 = vmul.f32 %v919, %v919
      %v1374 = vmul.f32 %v920, %v920
      %v1375 = vmul.f32 %v921, %v921
      %v1376 = vmul.f32 %v922, %v922
      %v1377 = vmul.f32 %v923, %v923
      %v1378 = vmul.f32 %v924, %v924
      %v1379 = vmul.f32 %v925, %v925
      %v1380 = vmul.f32 %v926, %v926
      %v1381 = vmul.f32 %v927, %v927
      %v1382 = vmul.f32 %v928, %v928
      %v1383 = vmul.f32 %v929, %v929
      %v1384 = vmul.f32 %v930, %v930
      %v1385 = vmul.f32 %v931, %v931
      %v1386 = vmul.f32 %v932, %v932
      %v1387 = vmul.f32 %v933, %v933
      %v1388 = vmul.f32 %v934, %v934
      %v1389 = vmul.f32 %v935, %v935
      %v1390 = vmul.f32 %v936, %v936
      %v1391 = vmul.f32 %v937, %v937
      %v1392 = vmul.f32 %v938, %v938
      %v1393 = vmul.f32 %v939, %v939
      %v1394 = vmul.f32 %v940, %v940
      %v1395 = vmul.f32 %v941, %v941
      %v1396 = vmul.f32 %v942, %v942
      %v1397 = vmul.f32 %v943, %v943
      %v1398 = vmul.f32 %v944, %v944
      %v1399 = vmul.f32 %v945, %v945
      %v1400 = vmul.f32 %v946, %v946
      %v1401 = vmul.f32 %v947, %v947
      %v1402 = vmul.f32 %v948, %v948
      %v1403 = vmul.f32 %v949, %v949
      %v1404 = vmul.f32 %v950, %v950
      %v1405 = vmul.f32 %v951, %v951
      %v1406 = vmul.f32 %v952, %v952
      %v1407 = vmul.f32 %v953, %v953
      %v1408 = vmul.f32 %v954, %v954
      %v1409 = vmul.f32 %v955, %v955
      %v1410 = vmul.f32 %v956, %v956
      %v1411 = vmul.f32 %v957, %v957
      %v1412 = vmul.f32 %v958, %v958
      %v1413 = vmul.f32 %v959, %v959
      %v1414 = vmul.f32 %v960, %v960
      %v1415 = vmul.f32 %v961, %v961
      %v1416 = vmul.f32 %v962, %v962
      %v1417 = vmul.f32 %v963, %v963
      %v1418 = vmul.f32 %v964, %v964
      %v1419 = vmul.f32 %v965, %v965
      %v1420 = vmul.f32 %v966, %v966
      %v1421 = vmul.f32 %v967, %v967
      %v1422 = vmul.f32 %v968, %v968
      %v1423 = vmul.f32 %v969, %v969
      %v1424 = vmul.f32 %v970, %v970
      %v1425 = vmul.f32 %v971, %v971
      %v1426 = vmul.f32 %v972, %v972
      %v1427 = vmul.f32 %v973, %v973
      %v1428 = vmul.f32 %v974, %v974
      %v1429 = vmul.f32 %v975, %v975
      %v1430 = vmul.f32 %v976, %v976
      %v1431 = vmul.f32 %v977, %v977
      %v1432 = vmul.f32 %v978, %v978
      %v1433 = vmul.f32 %v979, %v979
      %v1434 = vmul.f32 %v980, %v980
      %v1435 = vadd.f32 %v1371, %v1372
      %v1436 = vadd.f32 %v1435, %v1373
      %v1437 = vadd.f32 %v1436, %v1374
      %v1438 = vadd.f32 %v1437, %v1375
      %v1439 = vadd.f32 %v1438, %v1376
      %v1440 = vadd.f32 %v1439, %v1377
      %v1441 = vadd.f32 %v1440, %v1378
      %v1442 = vadd.f32 %v1441, %v1379
      %v1443 = vadd.f32 %v1442, %v1380
      %v1444 = vadd.f32 %v1443, %v1381
      %v1445 = vadd.f32 %v1444, %v1382
      %v1446 = vadd.f32 %v1445, %v1383
      %v1447 = vadd.f32 %v1446, %v1384
      %v1448 = vadd.f32 %v1447, %v1385
      %v1449 = vadd.f32 %v1448, %v1386
      %v1450 = vadd.f32 %v1449, %v1387
      %v1451 = vadd.f32 %v1450, %v1388
      %v1452 = vadd.f32 %v1451, %v1389
      %v1453 = vadd.f32 %v1452, %v1390
      %v1454 = vadd.f32 %v1453, %v1391
      %v1455 = vadd.f32 %v1454, %v1392
      %v1456 = vadd.f32 %v1455, %v1393
      %v1457 = vadd.f32 %v1456, %v1394
      %v1458 = vadd.f32 %v1457, %v1395
      %v1459 = vadd.f32 %v1458, %v1396
      %v1460 = vadd.f32 %v1459, %v1397
      %v1461 = vadd.f32 %v1460, %v1398
      %v1462 = vadd.f32 %v1461, %v1399
      %v1463 = vadd.f32 %v1462, %v1400
      %v1464 = vadd.f32 %v1463, %v1401
      %v1465 = vadd.f32 %v1464, %v1402
      %v1466 = vadd.f32 %v1465, %v1403
      %v1467 = vadd.f32 %v1466, %v1404
      %v1468 = vadd.f32 %v1467, %v1405
      %v1469 = vadd.f32 %v1468, %v1406
      %v1470 = vadd.f32 %v1469, %v1407
      %v1471 = vadd.f32 %v1470, %v1408
      %v1472 = vadd.f32 %v1471, %v1409
      %v1473 = vadd.f32 %v1472, %v1410
      %v1474 = vadd.f32 %v1473, %v1411
      %v1475 = vadd.f32 %v1474, %v1412
      %v1476 = vadd.f32 %v1475, %v1413
      %v1477 = vadd.f32 %v1476, %v1414
      %v1478 = vadd.f32 %v1477, %v1415
      %v1479 = vadd.f32 %v1478, %v1416
      %v1480 = vadd.f32 %v1479, %v1417
      %v1481 = vadd.f32 %v1480, %v1418
      %v1482 = vadd.f32 %v1481, %v1419
      %v1483 = vadd.f32 %v1482, %v1420
      %v1484 = vadd.f32 %v1483, %v1421
      %v1485 = vadd.f32 %v1484, %v1422
      %v1486 = vadd.f32 %v1485, %v1423
      %v1487 = vadd.f32 %v1486, %v1424
      %v1488 = vadd.f32 %v1487, %v1425
      %v1489 = vadd.f32 %v1488, %v1426
      %v1490 = vadd.f32 %v1489, %v1427
      %v1491 = vadd.f32 %v1490, %v1428
      %v1492 = vadd.f32 %v1491, %v1429
      %v1493 = vadd.f32 %v1492, %v1430
      %v1494 = vadd.f32 %v1493, %v1431
      %v1495 = vadd.f32 %v1494, %v1432
      %v1496 = vadd.f32 %v1495, %v1433
      %v1497 = vadd.f32 %v1496, %v1434
      %v1498 = vrot.slane %v1497, 4
      %v1499 = vadd.f32 %v1497, %v1498
      %v1500 = vrot.slane %v1499, 2
      %v1501 = vadd.f32 %v1499, %v1500
      %v1502 = vrot.slane %v1501, 1
      %v1503 = vadd.f32 %v1501, %v1502
      %1504 = vst [vmem:[#allocation11] sm:$0x1] %v1503
    $region25: #{tpu_custom_call.1} parent=1 // pred_fallthru
      _
    // Predicated region
    $region26: #{tpu_custom_call.1} parent=1 // pred_check
      _
    $region27: #{tpu_custom_call.1} parent=1 // pred_check_branch
      %1506 = sbr.rel (0) target = $region29
    $region28: #{tpu_custom_call.1} parent=1 // pred_region
      %s1508 = ssub.s32 4096, 4096
      %1509 = vsyncadd [#allocation5], %s1508
      %s1510 = sshll.u32 [#allocation8], 4
      %s1511 = int_to_ptr.vmem [resolvable:$true] %s1510
      %1516 = dma.vmem_to_hbm [thread:$0]  %s1511, 4096, %s2, [#allocation5], 64, 64, 4
    $region29: #{tpu_custom_call.1} parent=1 // pred_fallthru
      _
    // Predicated region
    $region30: #{tpu_custom_call.1} parent=1 // pred_check
      _
    $region31: #{tpu_custom_call.1} parent=1 // pred_check_branch
      %1518 = sbr.rel (0) target = $region33
    $region32: #{tpu_custom_call.1} parent=1 // pred_region
      %s1520 = ssub.s32 16, 16
      %1521 = vsyncadd [#allocation10], %s1520
      %s1523 = sshll.u32 [#allocation9], 4
      %s1524 = int_to_ptr.vmem [resolvable:$true] %s1523
      %1526 = dma.vmem_to_hbm [thread:$0]  %s1524, 16, %s3, [#allocation10]
    $region33: #{tpu_custom_call.1} parent=1 // pred_fallthru
      _
    // Predicated region
    $region34: #{tpu_custom_call.1} parent=1 // pred_check
      _
    $region35: #{tpu_custom_call.1} parent=1 // pred_check_branch
      %1528 = sbr.rel (0) target = $region37
    $region36: #{tpu_custom_call.1} parent=1 // pred_region
      %s1530 = ssub.s32 16, 16
      %1531 = vsyncadd [#allocation10], %s1530
      %s1533 = sshll.u32 [#allocation11], 4
      %s1534 = int_to_ptr.vmem [resolvable:$true] %s1533
      %1536 = dma.vmem_to_hbm [thread:$0]  %s1534, 16, %s4, [#allocation10]
    $region37: #{tpu_custom_call.1} parent=1 // pred_fallthru
      _
    // Predicated region
    $region38: #{tpu_custom_call.1} parent=1 // pred_check
      _
    $region39: #{tpu_custom_call.1} parent=1 // pred_check_branch
      %1538 = sbr.rel (0) target = $region41
    $region40: #{tpu_custom_call.1} parent=1 // pred_region
      %1539 = dma.done [#allocation5], 4096
    $region41: #{tpu_custom_call.1} parent=1 // pred_fallthru
      _
    // Predicated region
    $region42: #{tpu_custom_call.1} parent=1 // pred_check
      _
    $region43: #{tpu_custom_call.1} parent=1 // pred_check_branch
      %1541 = sbr.rel (0) target = $region45
    $region44: #{tpu_custom_call.1} parent=1 // pred_region
      %1542 = dma.done [#allocation10], 16
    $region45: #{tpu_custom_call.1} parent=1 // pred_fallthru
      _
    // Predicated region
    $region46: #{tpu_custom_call.1} parent=1 // pred_check
      _
    $region47: #{tpu_custom_call.1} parent=1 // pred_check_branch
      %1544 = sbr.rel (0) target = $region49
    $region48: #{tpu_custom_call.1} parent=1 // pred_region
      %1545 = dma.done [#allocation10], 16
    $region49: #{tpu_custom_call.1} parent=1 // pred_fallthru
      _
    %1546 = vsyncpa [#allocation4], 1
    %1547 = vsyncpa [#allocation7], 1
    %1548 = vsyncpa [#allocation5], 1
    %1549 = vsyncpa [#allocation10], 1

</llo_original>
